<compile_context>
chip_gen: v7x
topology: tpu7x:2x2x1
jax: 0.10.0
libtpu: 0.0.40
codegen_flags: <defaults>
</compile_context>

<pallas_src>
import functools

import jax
import jax.numpy as jnp
import numpy as np
from jax.experimental import pallas as pl
from jax.experimental.pallas import tpu as pltpu


def _round_up(x, m):
    return ((x + m - 1) // m) * m


def _sigmoid(x):
    # sigmoid(x) == 0.5 * (tanh(x / 2) + 1): single EUP push + VALU fma.
    return 0.5 * (jnp.tanh(0.5 * x) + 1.0)


# --------------------------------------------------------------------------------------
# Fused kernel. Grid = (batch blocks ["parallel"], time blocks ["arbitrary"]).
# Per time block:
#   1) one (block_t*block_b, D_pad) @ (D_pad, 4H_pad) GEMM for the input projection
#      of all block_t timesteps (off the per-step serial chain), bias folded in,
#   2) an unrolled loop over block_t steps, each doing ONE small (block_b, H_pad) @
#      (H_pad, 4H_pad) matmul plus gate math, with h/c carried in vregs.
# W_ih^T / W_hh^T live in single-buffered VMEM scratch (copied once per batch block);
# h/c persist in VMEM scratch across time blocks only.
# --------------------------------------------------------------------------------------
def _lstm_fused_kernel(bias_ref, x_ref, w_ih_hbm, w_hh_hbm, out_ref,
                       h_ref, c_ref, wih_ref, whh_ref, sems,
                       *, hidden_dim, seq_len, block_t, needs_mask, mxu_dtype):
    bt = pl.program_id(1)
    H = hidden_dim

    @pl.when(bt == 0)
    def _():
        # Fetch the loop-invariant weights once per batch block into single-buffered
        # VMEM. Start both DMAs first so they overlap the h/c zero-init.
        cp_ih = pltpu.make_async_copy(w_ih_hbm, wih_ref, sems.at[0])
        cp_hh = pltpu.make_async_copy(w_hh_hbm, whh_ref, sems.at[1])
        cp_ih.start()
        cp_hh.start()
        h_ref[...] = jnp.zeros_like(h_ref)
        c_ref[...] = jnp.zeros_like(c_ref)
        cp_ih.wait()
        cp_hh.wait()

    # ---- fused input projection for all block_t timesteps (time-parallel GEMM) --------
    tt, bb, dp = x_ref.shape
    x2 = x_ref[...].reshape(tt * bb, dp)          # merge (t, b) leading dims, layout-free
    gx = jnp.dot(x2, wih_ref[...], preferred_element_type=jnp.float32) + bias_ref[...]

    # ---- serial recurrence with h/c carried in registers -------------------------------
    h = h_ref[...]
    c = c_ref[...]
    whh = whh_ref[...]

    pad_from = (seq_len % block_t) if needs_mask else block_t
    for i in range(block_t):                       # static indices -> aligned slices
        gates = gx[i * bb:(i + 1) * bb, :] + jnp.dot(
            h.astype(mxu_dtype), whh, preferred_element_type=jnp.float32)
        # Gate order matches PyTorch: [i, f, g, o]; H is padded to 128 so every slice
        # falls on a clean 128-lane boundary.
        i_g = _sigmoid(gates[:, 0 * H:1 * H])
        f_g = _sigmoid(gates[:, 1 * H:2 * H])
        g_g = jnp.tanh(gates[:, 2 * H:3 * H])
        o_g = _sigmoid(gates[:, 3 * H:4 * H])
        c_new = f_g * c + i_g * g_g
        h_new = o_g * jnp.tanh(c_new)
        if needs_mask and i >= pad_from:
            # Padded timesteps (t >= seq_len) must not advance the state. Only step
            # indices >= T % block_t can ever be padded (and only in the last block).
            valid = (bt * block_t + i) < seq_len
            c_new = jnp.where(valid, c_new, c)
            h_new = jnp.where(valid, h_new, h)
        h, c = h_new, c_new

    h_ref[...] = h
    c_ref[...] = c
    # Output block index depends only on the batch-block axis, so Pallas keeps it
    # resident across time blocks; storing every block is cheap and always correct.
    out_ref[...] = h.astype(out_ref.dtype)


# --------------------------------------------------------------------------------------
# Wrapper
# --------------------------------------------------------------------------------------
def lstm_last_state(x, w_ih, w_hh, b_ih, b_hh, *, block_t=16, block_b=None,
                    mxu_dtype=jnp.bfloat16, vmem_limit_bytes=None):
    """x: (B, T, D) float32.  Returns (B, H) = h_T of a single-layer LSTM.

    mxu_dtype: dtype of the matmul operands (bf16 recommended on v6e/v7x; use f32 for
    bit-accurate comparison). Gate math / cell / hidden state always stay f32.
    """
    B, T, D = x.shape
    H4 = w_ih.shape[0]
    H = H4 // 4

    H_pad = _round_up(H, 128)
    D_pad = _round_up(D, 128)
    B_pad = _round_up(B, 8)
    block_t = max(1, min(block_t, T))            # no point unrolling past T
    T_pad = _round_up(T, block_t)
    if block_b is None:
        # Real megacore split on v7x whenever the batch permits it (keep multiple of 8).
        block_b = B_pad // 2 if (B_pad % 16 == 0) else B_pad
    assert B_pad % block_b == 0 and block_b % 8 == 0
    n_bt = T_pad // block_t
    n_bb = B_pad // block_b

    # ---- parameters: pad per-gate so each gate occupies H_pad cols, pre-transpose -----
    def pad_gate_rows(w):                         # (4H, X) -> (4*H_pad, X)
        X = w.shape[-1]
        w4 = w.reshape(4, H, X)
        return jnp.pad(w4, ((0, 0), (0, H_pad - H), (0, 0))).reshape(4 * H_pad, X)

    w_ih_p = jnp.pad(pad_gate_rows(w_ih), ((0, 0), (0, D_pad - D)))      # (4H_pad, D_pad)
    w_hh_p = jnp.pad(pad_gate_rows(w_hh), ((0, 0), (0, H_pad - H)))      # (4H_pad, H_pad)
    w_ih_t = jnp.transpose(w_ih_p, (1, 0)).astype(mxu_dtype)             # (D_pad, 4H_pad)
    w_hh_t = jnp.transpose(w_hh_p, (1, 0)).astype(mxu_dtype)             # (H_pad, 4H_pad)

    bias = (b_ih + b_hh).reshape(4, H)
    bias = jnp.pad(bias, ((0, 0), (0, H_pad - H))).reshape(1, 4 * H_pad)
    bias = bias.astype(jnp.float32)

    # x: (B, T, D) -> (T_pad, B_pad, D_pad), MXU dtype
    x_tbd = jnp.transpose(x, (1, 0, 2))
    x_p = jnp.pad(x_tbd, ((0, T_pad - T), (0, B_pad - B), (0, D_pad - D))).astype(mxu_dtype)

    # ---- explicit VMEM budget (matters on v7x: 64 MiB physical / 32 MiB default scoped)
    if vmem_limit_bytes is None:
        mxu_bytes = jnp.dtype(mxu_dtype).itemsize
        est = (2 * block_t * block_b * D_pad * mxu_bytes          # x double-buffer
               + 2 * 4 * H_pad * 4                                # bias double-buffer
               + 2 * block_b * H_pad * 4                          # out double-buffer
               + 2 * block_b * H_pad * 4                          # h, c scratch
               + (D_pad + H_pad) * 4 * H_pad * mxu_bytes          # W_ih^T + W_hh^T scratch
               + 2 * block_t * block_b * 4 * H_pad * 4)           # gx value + unroll temps
        vmem_limit_bytes = int(min(96 * 2**20, max(32 * 2**20, 2 * est)))

    kernel = functools.partial(
        _lstm_fused_kernel, hidden_dim=H_pad, seq_len=T, block_t=block_t,
        needs_mask=(T_pad != T), mxu_dtype=mxu_dtype)

    h_last = pl.pallas_call(
        kernel,
        out_shape=jax.ShapeDtypeStruct((B_pad, H_pad), jnp.float32),
        grid_spec=pltpu.PrefetchScalarGridSpec(
            num_scalar_prefetch=0,
            grid=(n_bb, n_bt),
            in_specs=[
                pl.BlockSpec((1, 4 * H_pad), lambda i, t: (0, 0)),               # bias
                pl.BlockSpec((block_t, block_b, D_pad), lambda i, t: (t, i, 0)),  # x block
                pl.BlockSpec(memory_space=pl.ANY),   # W_ih^T: raw ref, DMA'd once/batch blk
                pl.BlockSpec(memory_space=pl.ANY),   # W_hh^T: raw ref, DMA'd once/batch blk
            ],
            out_specs=pl.BlockSpec((block_b, H_pad), lambda i, t: (i, 0)),
            scratch_shapes=[
                pltpu.VMEM((block_b, H_pad), jnp.float32),       # h (f32)
                pltpu.VMEM((block_b, H_pad), jnp.float32),       # c (f32)
                pltpu.VMEM((D_pad, 4 * H_pad), mxu_dtype),       # W_ih^T, single-buffered
                pltpu.VMEM((H_pad, 4 * H_pad), mxu_dtype),       # W_hh^T, single-buffered
                pltpu.SemaphoreType.DMA((2,)),
            ],
        ),
        compiler_params=pltpu.CompilerParams(
            dimension_semantics=("parallel", "arbitrary"),   # batch parallel, time serial
            vmem_limit_bytes=vmem_limit_bytes,
        ),
    )(bias, x_p, w_ih_t, w_hh_t)

    return h_last[:B, :H]


# --------------------------------------------------------------------------------------
# Pure-JAX reference (lax.scan), f32 everywhere
# --------------------------------------------------------------------------------------
def lstm_last_state_ref(x, w_ih, w_hh, b_ih, b_hh):
    B, T, D = x.shape
    H = w_hh.shape[1]

    def step(carry, x_t):
        h, c = carry
        gates = x_t @ w_ih.T + h @ w_hh.T + b_ih + b_hh
        i_g = jax.nn.sigmoid(gates[:, 0 * H:1 * H])
        f_g = jax.nn.sigmoid(gates[:, 1 * H:2 * H])
        g_g = jnp.tanh(gates[:, 2 * H:3 * H])
        o_g = jax.nn.sigmoid(gates[:, 3 * H:4 * H])
        c = f_g * c + i_g * g_g
        h = o_g * jnp.tanh(c)
        return (h, c), None

    h0 = jnp.zeros((B, H), jnp.float32)
    c0 = jnp.zeros((B, H), jnp.float32)
    (h_T, _), _ = jax.lax.scan(step, (h0, c0), jnp.transpose(x, (1, 0, 2)))
    return h_T


if __name__ == "__main__":
    B, T, D, H = 4, 10, 8, 32  # batch, seq, input_dim, hidden_dim (small, module-consistent)

    key = jax.random.PRNGKey(0)
    kx, kwi, kwh, kbi, kbh = jax.random.split(key, 5)

    bound = 1.0 / np.sqrt(H)   # PyTorch-style U(-1/sqrt(H), 1/sqrt(H)) init
    x = jax.random.normal(kx, (B, T, D), dtype=jnp.float32)
    w_ih = jax.random.uniform(kwi, (4 * H, D), jnp.float32, -bound, bound)
    w_hh = jax.random.uniform(kwh, (4 * H, H), jnp.float32, -bound, bound)
    b_ih = jax.random.uniform(kbi, (4 * H,), jnp.float32, -bound, bound)
    b_hh = jax.random.uniform(kbh, (4 * H,), jnp.float32, -bound, bound)

    ref = jax.block_until_ready(lstm_last_state_ref(x, w_ih, w_hh, b_ih, b_hh))

    # f32 MXU operands: tight check (block_t=4 also exercises the time-padding mask, T=10).
    out_f32 = jax.block_until_ready(
        lstm_last_state(x, w_ih, w_hh, b_ih, b_hh, block_t=4, mxu_dtype=jnp.float32))
    assert out_f32.shape == (B, H), out_f32.shape
    np.testing.assert_allclose(np.asarray(out_f32), np.asarray(ref), rtol=1e-4, atol=1e-5)

    # bf16 MXU operands (perf path on v6e/v7x), f32 gate math / state: looser tolerance.
    # Default block_t (clamped to T=10) -> single time block, no mask path.
    out_bf16 = jax.block_until_ready(
        lstm_last_state(x, w_ih, w_hh, b_ih, b_hh, mxu_dtype=jnp.bfloat16))
    assert out_bf16.shape == (B, H), out_bf16.shape
    np.testing.assert_allclose(np.asarray(out_bf16), np.asarray(ref), rtol=2e-2, atol=1e-2)

    print("KERNEL_OK")
</pallas_src>

<mosaic_0001>
module attributes {stable_mosaic.version = 11 : i64} {
  func.func @_lstm_fused_kernel(%arg0: i32, %arg1: i32, %arg2: memref<1x512xf32, #tpu.memory_space<vmem>>, %arg3: memref<4x8x128xf32, #tpu.memory_space<vmem>>, %arg4: memref<128x512xf32, #tpu.memory_space<any>>, %arg5: memref<128x512xf32, #tpu.memory_space<any>>, %arg6: memref<8x128xf32, #tpu.memory_space<vmem>>, %arg7: memref<8x128xf32, #tpu.memory_space<vmem>>, %arg8: memref<8x128xf32, #tpu.memory_space<vmem>>, %arg9: memref<128x512xf32, #tpu.memory_space<vmem>>, %arg10: memref<128x512xf32, #tpu.memory_space<vmem>>, %arg11: memref<2x!tpu.dma_semaphore, #tpu.memory_space<semaphore_mem>>) attributes {dimension_semantics = [#tpu.dimension_semantics<parallel>, #tpu.dimension_semantics<arbitrary>], iteration_bounds = array<i64: 1, 3>, scalar_prefetch = 0 : i64, scratch_operands = 5 : i64, tpu.core_type = #tpu.core_type<tc>, window_params = [{pipeline_mode = #tpu.pipeline_mode<synchronous>, transform_indices = @transform_0, window_bounds = array<i64: 1, 512>}, {transform_indices = @transform_1, window_bounds = array<i64: 4, 8, 128>}, {}, {}, {transform_indices = @transform_4, window_bounds = array<i64: 8, 128>}]} {
    %c0_i32 = arith.constant 0 : i32
    %0 = arith.cmpi eq, %arg1, %c0_i32 : i32
    %1 = arith.extui %0 : i1 to i32
    %c0_i32_0 = arith.constant 0 : i32
    %2 = arith.cmpi ne, %1, %c0_i32_0 : i32
    scf.if %2 {
      %c0_i32_61 = arith.constant 0 : i32
      %162 = tpu.memref_slice %arg11[%c0_i32_61] : memref<2x!tpu.dma_semaphore, #tpu.memory_space<semaphore_mem>> -> memref<1x!tpu.dma_semaphore, #tpu.memory_space<semaphore_mem>>
      %163 = tpu.memref_squeeze %162 : memref<1x!tpu.dma_semaphore, #tpu.memory_space<semaphore_mem>> -> memref<!tpu.dma_semaphore, #tpu.memory_space<semaphore_mem>>
      tpu.enqueue_dma source(%arg4 : memref<128x512xf32, #tpu.memory_space<any>>) target(%arg9 : memref<128x512xf32, #tpu.memory_space<vmem>>) target_semaphore(%163 : memref<!tpu.dma_semaphore, #tpu.memory_space<semaphore_mem>>)
      %c1_i32 = arith.constant 1 : i32
      %164 = tpu.memref_slice %arg11[%c1_i32] : memref<2x!tpu.dma_semaphore, #tpu.memory_space<semaphore_mem>> -> memref<1x!tpu.dma_semaphore, #tpu.memory_space<semaphore_mem>>
      %165 = tpu.memref_squeeze %164 : memref<1x!tpu.dma_semaphore, #tpu.memory_space<semaphore_mem>> -> memref<!tpu.dma_semaphore, #tpu.memory_space<semaphore_mem>>
      tpu.enqueue_dma source(%arg5 : memref<128x512xf32, #tpu.memory_space<any>>) target(%arg10 : memref<128x512xf32, #tpu.memory_space<vmem>>) target_semaphore(%165 : memref<!tpu.dma_semaphore, #tpu.memory_space<semaphore_mem>>)
      %cst_62 = arith.constant 0.000000e+00 : f32
      %166 = vector.broadcast %cst_62 : f32 to vector<8x128xf32>
      %c0_63 = arith.constant 0 : index
      %c0_64 = arith.constant 0 : index
      %167 = vector.load %arg7[%c0_63, %c0_64] : memref<8x128xf32, #tpu.memory_space<vmem>>, vector<8x128xf32>
      tpu.vector_store %arg7[%c0_63, %c0_64], %166 {strides = array<i32>} : memref<8x128xf32, #tpu.memory_space<vmem>>, vector<8x128xf32>,
      %cst_65 = arith.constant 0.000000e+00 : f32
      %168 = vector.broadcast %cst_65 : f32 to vector<8x128xf32>
      %c0_66 = arith.constant 0 : index
      %c0_67 = arith.constant 0 : index
      %169 = vector.load %arg8[%c0_66, %c0_67] : memref<8x128xf32, #tpu.memory_space<vmem>>, vector<8x128xf32>
      tpu.vector_store %arg8[%c0_66, %c0_67], %168 {strides = array<i32>} : memref<8x128xf32, #tpu.memory_space<vmem>>, vector<8x128xf32>,
      %c0_i32_68 = arith.constant 0 : i32
      %170 = tpu.memref_slice %arg11[%c0_i32_68] : memref<2x!tpu.dma_semaphore, #tpu.memory_space<semaphore_mem>> -> memref<1x!tpu.dma_semaphore, #tpu.memory_space<semaphore_mem>>
      %171 = tpu.memref_squeeze %170 : memref<1x!tpu.dma_semaphore, #tpu.memory_space<semaphore_mem>> -> memref<!tpu.dma_semaphore, #tpu.memory_space<semaphore_mem>>
      tpu.wait_dma2 semaphore(%171 : memref<!tpu.dma_semaphore, #tpu.memory_space<semaphore_mem>>) src(%arg4 : memref<128x512xf32, #tpu.memory_space<any>>) dst(%arg9 : memref<128x512xf32, #tpu.memory_space<vmem>>)
      %c1_i32_69 = arith.constant 1 : i32
      %172 = tpu.memref_slice %arg11[%c1_i32_69] : memref<2x!tpu.dma_semaphore, #tpu.memory_space<semaphore_mem>> -> memref<1x!tpu.dma_semaphore, #tpu.memory_space<semaphore_mem>>
      %173 = tpu.memref_squeeze %172 : memref<1x!tpu.dma_semaphore, #tpu.memory_space<semaphore_mem>> -> memref<!tpu.dma_semaphore, #tpu.memory_space<semaphore_mem>>
      tpu.wait_dma2 semaphore(%173 : memref<!tpu.dma_semaphore, #tpu.memory_space<semaphore_mem>>) src(%arg5 : memref<128x512xf32, #tpu.memory_space<any>>) dst(%arg10 : memref<128x512xf32, #tpu.memory_space<vmem>>)
    } else {
    }
    %c0 = arith.constant 0 : index
    %c0_1 = arith.constant 0 : index
    %c0_2 = arith.constant 0 : index
    %3 = vector.load %arg3[%c0, %c0_1, %c0_2] : memref<4x8x128xf32, #tpu.memory_space<vmem>>, vector<4x8x128xf32>
    %4 = vector.shape_cast %3 : vector<4x8x128xf32> to vector<32x128xf32>
    %c0_3 = arith.constant 0 : index
    %c0_4 = arith.constant 0 : index
    %5 = vector.load %arg9[%c0_3, %c0_4] : memref<128x512xf32, #tpu.memory_space<vmem>>, vector<128x512xf32>
    %cst = arith.constant dense<0.000000e+00> : vector<32x512xf32>
    %6 = tpu.matmul %4, %5, %cst {dimension_numbers = #tpu.dot_dimension_numbers<[1], [0], [0], [1], [0, 0, 1, 1], [], []>} : vector<32x128xf32>, vector<128x512xf32>, vector<32x512xf32> -> vector<32x512xf32>
    %c0_5 = arith.constant 0 : index
    %c0_6 = arith.constant 0 : index
    %7 = vector.load %arg2[%c0_5, %c0_6] : memref<1x512xf32, #tpu.memory_space<vmem>>, vector<1x512xf32>
    %8 = vector.broadcast %7 : vector<1x512xf32> to vector<32x512xf32>
    %9 = arith.addf %6, %8 : vector<32x512xf32>
    %c0_7 = arith.constant 0 : index
    %c0_8 = arith.constant 0 : index
    %10 = vector.load %arg7[%c0_7, %c0_8] : memref<8x128xf32, #tpu.memory_space<vmem>>, vector<8x128xf32>
    %c0_9 = arith.constant 0 : index
    %c0_10 = arith.constant 0 : index
    %11 = vector.load %arg8[%c0_9, %c0_10] : memref<8x128xf32, #tpu.memory_space<vmem>>, vector<8x128xf32>
    %c0_11 = arith.constant 0 : index
    %c0_12 = arith.constant 0 : index
    %12 = vector.load %arg10[%c0_11, %c0_12] : memref<128x512xf32, #tpu.memory_space<vmem>>, vector<128x512xf32>
    %13 = vector.extract_strided_slice %9 {offsets = [0, 0], sizes = [8, 512], strides = [1, 1]} : vector<32x512xf32> to vector<8x512xf32>
    %cst_13 = arith.constant dense<0.000000e+00> : vector<8x512xf32>
    %14 = tpu.matmul %10, %12, %cst_13 {dimension_numbers = #tpu.dot_dimension_numbers<[1], [0], [0], [1], [0, 0, 1, 1], [], []>} : vector<8x128xf32>, vector<128x512xf32>, vector<8x512xf32> -> vector<8x512xf32>
    %15 = arith.addf %13, %14 : vector<8x512xf32>
    %16 = vector.extract_strided_slice %15 {offsets = [0, 0], sizes = [8, 128], strides = [1, 1]} : vector<8x512xf32> to vector<8x128xf32>
    %cst_14 = arith.constant 5.000000e-01 : f32
    %17 = vector.broadcast %cst_14 : f32 to vector<8x128xf32>
    %18 = arith.mulf %17, %16 : vector<8x128xf32>
    %19 = math.tanh %18 : vector<8x128xf32>
    %cst_15 = arith.constant 1.000000e+00 : f32
    %20 = vector.broadcast %cst_15 : f32 to vector<8x128xf32>
    %21 = arith.addf %19, %20 : vector<8x128xf32>
    %cst_16 = arith.constant 5.000000e-01 : f32
    %22 = vector.broadcast %cst_16 : f32 to vector<8x128xf32>
    %23 = arith.mulf %22, %21 : vector<8x128xf32>
    %24 = vector.extract_strided_slice %15 {offsets = [0, 128], sizes = [8, 128], strides = [1, 1]} : vector<8x512xf32> to vector<8x128xf32>
    %cst_17 = arith.constant 5.000000e-01 : f32
    %25 = vector.broadcast %cst_17 : f32 to vector<8x128xf32>
    %26 = arith.mulf %25, %24 : vector<8x128xf32>
    %27 = math.tanh %26 : vector<8x128xf32>
    %cst_18 = arith.constant 1.000000e+00 : f32
    %28 = vector.broadcast %cst_18 : f32 to vector<8x128xf32>
    %29 = arith.addf %27, %28 : vector<8x128xf32>
    %cst_19 = arith.constant 5.000000e-01 : f32
    %30 = vector.broadcast %cst_19 : f32 to vector<8x128xf32>
    %31 = arith.mulf %30, %29 : vector<8x128xf32>
    %32 = vector.extract_strided_slice %15 {offsets = [0, 256], sizes = [8, 128], strides = [1, 1]} : vector<8x512xf32> to vector<8x128xf32>
    %33 = math.tanh %32 : vector<8x128xf32>
    %34 = vector.extract_strided_slice %15 {offsets = [0, 384], sizes = [8, 128], strides = [1, 1]} : vector<8x512xf32> to vector<8x128xf32>
    %cst_20 = arith.constant 5.000000e-01 : f32
    %35 = vector.broadcast %cst_20 : f32 to vector<8x128xf32>
    %36 = arith.mulf %35, %34 : vector<8x128xf32>
    %37 = math.tanh %36 : vector<8x128xf32>
    %cst_21 = arith.constant 1.000000e+00 : f32
    %38 = vector.broadcast %cst_21 : f32 to vector<8x128xf32>
    %39 = arith.addf %37, %38 : vector<8x128xf32>
    %cst_22 = arith.constant 5.000000e-01 : f32
    %40 = vector.broadcast %cst_22 : f32 to vector<8x128xf32>
    %41 = arith.mulf %40, %39 : vector<8x128xf32>
    %42 = arith.mulf %31, %11 : vector<8x128xf32>
    %43 = arith.mulf %23, %33 : vector<8x128xf32>
    %44 = arith.addf %42, %43 : vector<8x128xf32>
    %45 = math.tanh %44 : vector<8x128xf32>
    %46 = arith.mulf %41, %45 : vector<8x128xf32>
    %47 = vector.extract_strided_slice %9 {offsets = [8, 0], sizes = [8, 512], strides = [1, 1]} : vector<32x512xf32> to vector<8x512xf32>
    %cst_23 = arith.constant dense<0.000000e+00> : vector<8x512xf32>
    %48 = tpu.matmul %46, %12, %cst_23 {dimension_numbers = #tpu.dot_dimension_numbers<[1], [0], [0], [1], [0, 0, 1, 1], [], []>} : vector<8x128xf32>, vector<128x512xf32>, vector<8x512xf32> -> vector<8x512xf32>
    %49 = arith.addf %47, %48 : vector<8x512xf32>
    %50 = vector.extract_strided_slice %49 {offsets = [0, 0], sizes = [8, 128], strides = [1, 1]} : vector<8x512xf32> to vector<8x128xf32>
    %cst_24 = arith.constant 5.000000e-01 : f32
    %51 = vector.broadcast %cst_24 : f32 to vector<8x128xf32>
    %52 = arith.mulf %51, %50 : vector<8x128xf32>
    %53 = math.tanh %52 : vector<8x128xf32>
    %cst_25 = arith.constant 1.000000e+00 : f32
    %54 = vector.broadcast %cst_25 : f32 to vector<8x128xf32>
    %55 = arith.addf %53, %54 : vector<8x128xf32>
    %cst_26 = arith.constant 5.000000e-01 : f32
    %56 = vector.broadcast %cst_26 : f32 to vector<8x128xf32>
    %57 = arith.mulf %56, %55 : vector<8x128xf32>
    %58 = vector.extract_strided_slice %49 {offsets = [0, 128], sizes = [8, 128], strides = [1, 1]} : vector<8x512xf32> to vector<8x128xf32>
    %cst_27 = arith.constant 5.000000e-01 : f32
    %59 = vector.broadcast %cst_27 : f32 to vector<8x128xf32>
    %60 = arith.mulf %59, %58 : vector<8x128xf32>
    %61 = math.tanh %60 : vector<8x128xf32>
    %cst_28 = arith.constant 1.000000e+00 : f32
    %62 = vector.broadcast %cst_28 : f32 to vector<8x128xf32>
    %63 = arith.addf %61, %62 : vector<8x128xf32>
    %cst_29 = arith.constant 5.000000e-01 : f32
    %64 = vector.broadcast %cst_29 : f32 to vector<8x128xf32>
    %65 = arith.mulf %64, %63 : vector<8x128xf32>
    %66 = vector.extract_strided_slice %49 {offsets = [0, 256], sizes = [8, 128], strides = [1, 1]} : vector<8x512xf32> to vector<8x128xf32>
    %67 = math.tanh %66 : vector<8x128xf32>
    %68 = vector.extract_strided_slice %49 {offsets = [0, 384], sizes = [8, 128], strides = [1, 1]} : vector<8x512xf32> to vector<8x128xf32>
    %cst_30 = arith.constant 5.000000e-01 : f32
    %69 = vector.broadcast %cst_30 : f32 to vector<8x128xf32>
    %70 = arith.mulf %69, %68 : vector<8x128xf32>
    %71 = math.tanh %70 : vector<8x128xf32>
    %cst_31 = arith.constant 1.000000e+00 : f32
    %72 = vector.broadcast %cst_31 : f32 to vector<8x128xf32>
    %73 = arith.addf %71, %72 : vector<8x128xf32>
    %cst_32 = arith.constant 5.000000e-01 : f32
    %74 = vector.broadcast %cst_32 : f32 to vector<8x128xf32>
    %75 = arith.mulf %74, %73 : vector<8x128xf32>
    %76 = arith.mulf %65, %44 : vector<8x128xf32>
    %77 = arith.mulf %57, %67 : vector<8x128xf32>
    %78 = arith.addf %76, %77 : vector<8x128xf32>
    %79 = math.tanh %78 : vector<8x128xf32>
    %80 = arith.mulf %75, %79 : vector<8x128xf32>
    %81 = vector.extract_strided_slice %9 {offsets = [16, 0], sizes = [8, 512], strides = [1, 1]} : vector<32x512xf32> to vector<8x512xf32>
    %cst_33 = arith.constant dense<0.000000e+00> : vector<8x512xf32>
    %82 = tpu.matmul %80, %12, %cst_33 {dimension_numbers = #tpu.dot_dimension_numbers<[1], [0], [0], [1], [0, 0, 1, 1], [], []>} : vector<8x128xf32>, vector<128x512xf32>, vector<8x512xf32> -> vector<8x512xf32>
    %83 = arith.addf %81, %82 : vector<8x512xf32>
    %84 = vector.extract_strided_slice %83 {offsets = [0, 0], sizes = [8, 128], strides = [1, 1]} : vector<8x512xf32> to vector<8x128xf32>
    %cst_34 = arith.constant 5.000000e-01 : f32
    %85 = vector.broadcast %cst_34 : f32 to vector<8x128xf32>
    %86 = arith.mulf %85, %84 : vector<8x128xf32>
    %87 = math.tanh %86 : vector<8x128xf32>
    %cst_35 = arith.constant 1.000000e+00 : f32
    %88 = vector.broadcast %cst_35 : f32 to vector<8x128xf32>
    %89 = arith.addf %87, %88 : vector<8x128xf32>
    %cst_36 = arith.constant 5.000000e-01 : f32
    %90 = vector.broadcast %cst_36 : f32 to vector<8x128xf32>
    %91 = arith.mulf %90, %89 : vector<8x128xf32>
    %92 = vector.extract_strided_slice %83 {offsets = [0, 128], sizes = [8, 128], strides = [1, 1]} : vector<8x512xf32> to vector<8x128xf32>
    %cst_37 = arith.constant 5.000000e-01 : f32
    %93 = vector.broadcast %cst_37 : f32 to vector<8x128xf32>
    %94 = arith.mulf %93, %92 : vector<8x128xf32>
    %95 = math.tanh %94 : vector<8x128xf32>
    %cst_38 = arith.constant 1.000000e+00 : f32
    %96 = vector.broadcast %cst_38 : f32 to vector<8x128xf32>
    %97 = arith.addf %95, %96 : vector<8x128xf32>
    %cst_39 = arith.constant 5.000000e-01 : f32
    %98 = vector.broadcast %cst_39 : f32 to vector<8x128xf32>
    %99 = arith.mulf %98, %97 : vector<8x128xf32>
    %100 = vector.extract_strided_slice %83 {offsets = [0, 256], sizes = [8, 128], strides = [1, 1]} : vector<8x512xf32> to vector<8x128xf32>
    %101 = math.tanh %100 : vector<8x128xf32>
    %102 = vector.extract_strided_slice %83 {offsets = [0, 384], sizes = [8, 128], strides = [1, 1]} : vector<8x512xf32> to vector<8x128xf32>
    %cst_40 = arith.constant 5.000000e-01 : f32
    %103 = vector.broadcast %cst_40 : f32 to vector<8x128xf32>
    %104 = arith.mulf %103, %102 : vector<8x128xf32>
    %105 = math.tanh %104 : vector<8x128xf32>
    %cst_41 = arith.constant 1.000000e+00 : f32
    %106 = vector.broadcast %cst_41 : f32 to vector<8x128xf32>
    %107 = arith.addf %105, %106 : vector<8x128xf32>
    %cst_42 = arith.constant 5.000000e-01 : f32
    %108 = vector.broadcast %cst_42 : f32 to vector<8x128xf32>
    %109 = arith.mulf %108, %107 : vector<8x128xf32>
    %110 = arith.mulf %99, %78 : vector<8x128xf32>
    %111 = arith.mulf %91, %101 : vector<8x128xf32>
    %112 = arith.addf %110, %111 : vector<8x128xf32>
    %113 = math.tanh %112 : vector<8x128xf32>
    %114 = arith.mulf %109, %113 : vector<8x128xf32>
    %c4_i32 = arith.constant 4 : i32
    %115 = arith.muli %arg1, %c4_i32 : i32
    %c2_i32 = arith.constant 2 : i32
    %116 = arith.addi %115, %c2_i32 : i32
    %c10_i32 = arith.constant 10 : i32
    %117 = arith.cmpi slt, %116, %c10_i32 : i32
    %118 = arith.select %117, %112, %78 : vector<8x128xf32>
    %119 = arith.select %117, %114, %80 : vector<8x128xf32>
    %120 = vector.extract_strided_slice %9 {offsets = [24, 0], sizes = [8, 512], strides = [1, 1]} : vector<32x512xf32> to vector<8x512xf32>
    %cst_43 = arith.constant dense<0.000000e+00> : vector<8x512xf32>
    %121 = tpu.matmul %119, %12, %cst_43 {dimension_numbers = #tpu.dot_dimension_numbers<[1], [0], [0], [1], [0, 0, 1, 1], [], []>} : vector<8x128xf32>, vector<128x512xf32>, vector<8x512xf32> -> vector<8x512xf32>
    %122 = arith.addf %120, %121 : vector<8x512xf32>
    %123 = vector.extract_strided_slice %122 {offsets = [0, 0], sizes = [8, 128], strides = [1, 1]} : vector<8x512xf32> to vector<8x128xf32>
    %cst_44 = arith.constant 5.000000e-01 : f32
    %124 = vector.broadcast %cst_44 : f32 to vector<8x128xf32>
    %125 = arith.mulf %124, %123 : vector<8x128xf32>
    %126 = math.tanh %125 : vector<8x128xf32>
    %cst_45 = arith.constant 1.000000e+00 : f32
    %127 = vector.broadcast %cst_45 : f32 to vector<8x128xf32>
    %128 = arith.addf %126, %127 : vector<8x128xf32>
    %cst_46 = arith.constant 5.000000e-01 : f32
    %129 = vector.broadcast %cst_46 : f32 to vector<8x128xf32>
    %130 = arith.mulf %129, %128 : vector<8x128xf32>
    %131 = vector.extract_strided_slice %122 {offsets = [0, 128], sizes = [8, 128], strides = [1, 1]} : vector<8x512xf32> to vector<8x128xf32>
    %cst_47 = arith.constant 5.000000e-01 : f32
    %132 = vector.broadcast %cst_47 : f32 to vector<8x128xf32>
    %133 = arith.mulf %132, %131 : vector<8x128xf32>
    %134 = math.tanh %133 : vector<8x128xf32>
    %cst_48 = arith.constant 1.000000e+00 : f32
    %135 = vector.broadcast %cst_48 : f32 to vector<8x128xf32>
    %136 = arith.addf %134, %135 : vector<8x128xf32>
    %cst_49 = arith.constant 5.000000e-01 : f32
    %137 = vector.broadcast %cst_49 : f32 to vector<8x128xf32>
    %138 = arith.mulf %137, %136 : vector<8x128xf32>
    %139 = vector.extract_strided_slice %122 {offsets = [0, 256], sizes = [8, 128], strides = [1, 1]} : vector<8x512xf32> to vector<8x128xf32>
    %140 = math.tanh %139 : vector<8x128xf32>
    %141 = vector.extract_strided_slice %122 {offsets = [0, 384], sizes = [8, 128], strides = [1, 1]} : vector<8x512xf32> to vector<8x128xf32>
    %cst_50 = arith.constant 5.000000e-01 : f32
    %142 = vector.broadcast %cst_50 : f32 to vector<8x128xf32>
    %143 = arith.mulf %142, %141 : vector<8x128xf32>
    %144 = math.tanh %143 : vector<8x128xf32>
    %cst_51 = arith.constant 1.000000e+00 : f32
    %145 = vector.broadcast %cst_51 : f32 to vector<8x128xf32>
    %146 = arith.addf %144, %145 : vector<8x128xf32>
    %cst_52 = arith.constant 5.000000e-01 : f32
    %147 = vector.broadcast %cst_52 : f32 to vector<8x128xf32>
    %148 = arith.mulf %147, %146 : vector<8x128xf32>
    %149 = arith.mulf %138, %118 : vector<8x128xf32>
    %150 = arith.mulf %130, %140 : vector<8x128xf32>
    %151 = arith.addf %149, %150 : vector<8x128xf32>
    %152 = math.tanh %151 : vector<8x128xf32>
    %153 = arith.mulf %148, %152 : vector<8x128xf32>
    %c4_i32_53 = arith.constant 4 : i32
    %154 = arith.muli %arg1, %c4_i32_53 : i32
    %c3_i32 = arith.constant 3 : i32
    %155 = arith.addi %154, %c3_i32 : i32
    %c10_i32_54 = arith.constant 10 : i32
    %156 = arith.cmpi slt, %155, %c10_i32_54 : i32
    %157 = arith.select %156, %151, %118 : vector<8x128xf32>
    %158 = arith.select %156, %153, %119 : vector<8x128xf32>
    %c0_55 = arith.constant 0 : index
    %c0_56 = arith.constant 0 : index
    %159 = vector.load %arg7[%c0_55, %c0_56] : memref<8x128xf32, #tpu.memory_space<vmem>>, vector<8x128xf32>
    tpu.vector_store %arg7[%c0_55, %c0_56], %158 {strides = array<i32>} : memref<8x128xf32, #tpu.memory_space<vmem>>, vector<8x128xf32>,
    %c0_57 = arith.constant 0 : index
    %c0_58 = arith.constant 0 : index
    %160 = vector.load %arg8[%c0_57, %c0_58] : memref<8x128xf32, #tpu.memory_space<vmem>>, vector<8x128xf32>
    tpu.vector_store %arg8[%c0_57, %c0_58], %157 {strides = array<i32>} : memref<8x128xf32, #tpu.memory_space<vmem>>, vector<8x128xf32>,
    %c0_59 = arith.constant 0 : index
    %c0_60 = arith.constant 0 : index
    %161 = vector.load %arg6[%c0_59, %c0_60] : memref<8x128xf32, #tpu.memory_space<vmem>>, vector<8x128xf32>
    tpu.vector_store %arg6[%c0_59, %c0_60], %158 {strides = array<i32>} : memref<8x128xf32, #tpu.memory_space<vmem>>, vector<8x128xf32>,
    return
  }
  func.func @transform_0(%arg0: i32, %arg1: i32) -> (i32, i32) {
    %c0_i32 = arith.constant 0 : i32
    %c0_i32_0 = arith.constant 0 : i32
    %c0_i32_1 = arith.constant 0 : i32
    return %c0_i32, %c0_i32_0 : i32, i32
  }
  func.func @transform_1(%arg0: i32, %arg1: i32) -> (i32, i32, i32) {
    %c0_i32 = arith.constant 0 : i32
    %c0_i32_0 = arith.constant 0 : i32
    return %arg1, %arg0, %c0_i32 : i32, i32, i32
  }
  func.func @transform_4(%arg0: i32, %arg1: i32) -> (i32, i32) {
    %c0_i32 = arith.constant 0 : i32
    %c0_i32_0 = arith.constant 0 : i32
    return %arg0, %c0_i32 : i32, i32
  }
}

</mosaic_0001>

<llo_original>
// kernel: tpu_custom_call.1
$region0: #{tpu_custom_call.1}
  #allocation0 [shape = 'u32[]', space=smem, size = 0x4, offset = 0x4, fixed_abs, tag = 'smem constant byte address 0x4 - core index']
  #allocation1 [shape = 'u32[144,128]{1,0:T(1,128)}', space=vmem, size = 0x12000, scoped, tag = 'internal scratch']
  #allocation2 [shape = 'f32[8,128]{1,0:T(8,128)}', space=vmem, size = 0x1000, scoped, tag = 'scratch operand']
  #allocation3 [shape = 'f32[8,128]{1,0:T(8,128)}', space=vmem, size = 0x1000, scoped, tag = 'scratch operand']
  #allocation4 [shape = 'f32[128,512]{1,0:T(8,128)}', space=vmem, size = 0x40000, scoped, tag = 'scratch operand']
  #allocation5 [shape = 'f32[128,512]{1,0:T(8,128)}', space=vmem, size = 0x40000, scoped, tag = 'scratch operand']
  #allocation6 [shape = 's32[2]{0}', space=sflag, size = 0x8, scoped, tag = 'scratch operand']
  #allocation13 [shape = 's32[]', space=sflag, size = 0x4, offset = 0, fixed_abs, tag = 'sflag constant byte address 0x0 - dummy sync flag']
  #allocation14 [shape = 's32[]', space=sflag, size = 0x4, offset = 0, fixed_abs, tag = 'sflag constant byte address 0x0 - dummy sync flag']
  #allocation15 [shape = 'u32[]', space=smem, size = 0x4, offset = 0x44, fixed_abs, tag = 'smem constant byte address 0x44 - assertion arg 0']
  #allocation16 [shape = 'u32[]', space=smem, size = 0x4, offset = 0x48, fixed_abs, tag = 'smem constant byte address 0x48 - assertion arg 1']
  #allocation17 [shape = 's32[]', space=sflag, size = 0x4, offset = 0, fixed_abs, tag = 'sflag constant byte address 0x0 - dummy sync flag']
  #allocation18 [shape = 's32[]', space=sflag, size = 0x4, offset = 0, fixed_abs, tag = 'sflag constant byte address 0x0 - dummy sync flag']
  %s0 = inlined_call_operand.hbm [shape: f32[1,512], index: 0, kind: input, shape index: {}]
  %s1 = inlined_call_operand.hbm [shape: f32[12,8,128], index: 1, kind: input, shape index: {}]
  %s2 = inlined_call_operand.hbm [shape: f32[128,512], index: 2, kind: input, shape index: {}]
  %s3 = inlined_call_operand.hbm [shape: f32[128,512], index: 3, kind: input, shape index: {}]
  %s4 = inlined_call_operand.hbm [shape: f32[8,128], index: 4, kind: output, shape index: {}]
  %s5 = sld [smem:[#allocation0]]
  $region61: #{tpu_custom_call.1} parent=0
    _
  %s7 = ssub.s32 1, %s5
  %s8 = scalar_select 0, %s7, %s5
  $region1: #{tpu_custom_call.1} parent=0
    #allocation7 [shape = 'u8[2048]{0}', space=vmem, size = 0x800, scoped, tag = 'input window, operand 0, single buffered']
    #allocation8 [shape = 's32[2]{0}', space=sflag, size = 0x8, scoped, tag = 'scoped memory for tpu_custom_call.1']
    #allocation9 [shape = 's32[2]{0}', space=sflag, size = 0x8, scoped, tag = 'scoped memory for tpu_custom_call.1']
    #allocation10 [shape = 'u8[32768]{0}', space=vmem, size = 0x8000, scoped, tag = 'input window, operand 1']
    #allocation11 [shape = 's32[2]{0}', space=sflag, size = 0x8, scoped, tag = 'scoped memory for tpu_custom_call.1']
    #allocation12 [shape = 'u8[4096]{0}', space=vmem, size = 0x1000, scoped, tag = 'output window, operand 0, single buffered']
    %9 = vsyncpa [#allocation8], 0
    %10 = vsyncpa [#allocation11], 0
    %s11 = scalar_lea.sflag [#allocation11], 1
    %12 = vsyncpa %s11, 0
    %13 = vsyncpa [#allocation9], 0
    loop: start=0, step=1, limit=5
    $region2: #{tpu_custom_call.1} parent=1 // loop_pre_header
      _
    $region3: #{tpu_custom_call.1} parent=1 // loop_header
      %s15 = sphi 0, %s19
      %p16 = scmp.ge.s32.totalorder %s15, 5
      %s22 = sphi 0, %s34
      %s23 = sphi 0, %s30
      %s24 = sphi 0, %s22
      %s25 = sphi 0, %s23
      %s26 = sphi 0, %s24
      %s27 = sphi 0, %s25
      %s35 = sphi 0, %s35
      %s37 = sphi 0, %s35
      %s38 = sphi 0, %s37
      %s52 = sphi 0, %s38
      %s60 = sphi 0, %s62
      %s63 = sphi 0, %s60
      %s64 = sphi 0, %s63
      %s80 = sphi 0, %s64
      %s86 = sphi 0, %s88
      %s89 = sphi 0, %s86
      %s90 = sphi 0, %s89
      %s106 = sphi 0, %s90
    $region4: #{tpu_custom_call.1} parent=1 // loop_header_branch
      %18 = sbr.rel (%p16) target = $region8
    $region5: #{tpu_custom_call.1} parent=1 // loop_body
      %s20 = ssub.s32 %s15, 1
      %s21 = ssub.s32 %s15, 2
      %s28 = sadd.s32 1, %s23
      %p29 = scmp.ge.s32.totalorder %s28, 3
      %s30 = scalar_select %p29, 0, %s28
      %s31 = sadd.s32 1, %s22
      %s32 = scalar_select %p29, %s31, %s22
      %p33 = scmp.ge.s32.totalorder %s32, 1
      %s34 = scalar_select %p33, 0, %s32
      %s36 = sadd.s32 %s35, 1
      %p39 = scmp.eq.s32.totalorder %s15, 2
      %p40 = scmp.ne.s32.totalorder %s35, %s37
      %p41 = scmp.eq.s32.totalorder %s15, 0
      %p42 = por %p40, %p41
      %p43 = scmp.ne.s32.totalorder %s35, %s37
      %p44 = scmp.eq.s32.totalorder %s20, 2
      %p45 = por %p43, %p44
      %p46 = scmp.ne.s32.totalorder %s37, %s38
      %p47 = scmp.eq.s32.totalorder %s20, 0
      %p48 = por %p46, %p47
      %p49 = scmp.ne.s32.totalorder %s37, %s38
      %p50 = scmp.eq.s32.totalorder %s21, 2
      %p51 = por %p49, %p50
      %p53 = scmp.ne.s32.totalorder %s38, %s52
      %p54 = scmp.eq.s32.totalorder %s21, 0
      %p55 = por %p53, %p54
      %s56 = ssub.s32 %s23, %s30
      %s57 = ssub.s32 %s22, %s34
      %s58 = sor.u32 %s56, %s57
      %p59 = scmp.eq.s32.totalorder %s58, 0
      %s61 = sadd.s32 %s60, 1
      %s62 = scalar_select %p59, %s60, %s61
      %p65 = pneg %p59
      %p66 = scmp.eq.s32.totalorder %s15, 2
      %p67 = por %p65, %p66
      %p68 = scmp.ne.s32.totalorder %s60, %s63
      %p69 = scmp.eq.s32.totalorder %s15, 0
      %p70 = por %p68, %p69
      %p71 = scmp.ne.s32.totalorder %s60, %s63
      %p72 = scmp.eq.s32.totalorder %s20, 2
      %p73 = por %p71, %p72
      %p74 = scmp.ne.s32.totalorder %s63, %s64
      %p75 = scmp.eq.s32.totalorder %s20, 0
      %p76 = por %p74, %p75
      %p77 = scmp.ne.s32.totalorder %s63, %s64
      %p78 = scmp.eq.s32.totalorder %s21, 2
      %p79 = por %p77, %p78
      %p81 = scmp.ne.s32.totalorder %s64, %s80
      %p82 = scmp.eq.s32.totalorder %s21, 0
      %p83 = por %p81, %p82
      %s84 = ssub.s32 %s22, %s34
      %p85 = scmp.eq.s32.totalorder %s84, 0
      %s87 = sadd.s32 %s86, 1
      %s88 = scalar_select %p85, %s86, %s87
      %p91 = pneg %p85
      %p92 = scmp.eq.s32.totalorder %s15, 2
      %p93 = por %p91, %p92
      %p94 = scmp.ne.s32.totalorder %s86, %s89
      %p95 = scmp.eq.s32.totalorder %s15, 0
      %p96 = por %p94, %p95
      %p97 = scmp.ne.s32.totalorder %s86, %s89
      %p98 = scmp.eq.s32.totalorder %s20, 2
      %p99 = por %p97, %p98
      %p100 = scmp.ne.s32.totalorder %s89, %s90
      %p101 = scmp.eq.s32.totalorder %s20, 0
      %p102 = por %p100, %p101
      %p103 = scmp.ne.s32.totalorder %s89, %s90
      %p104 = scmp.eq.s32.totalorder %s21, 2
      %p105 = por %p103, %p104
      %p107 = scmp.ne.s32.totalorder %s90, %s106
      %p108 = scmp.eq.s32.totalorder %s21, 0
      %p109 = por %p107, %p108
      %p110 = scmp.le.s32.totalorder 1, %s15
      %p111 = scmp.lt.s32.totalorder %s15, 4
      %p112 = pnand %p110, %p111
      %p113 = pneg %p112
      // Predicated region
      $region9: #{tpu_custom_call.1} parent=5 // pred_check
        _
      $region10: #{tpu_custom_call.1} parent=5 // pred_check_branch
        %115 = sbr.rel (%p112) target = $region12
      $region11: #{tpu_custom_call.1} parent=5 // pred_region
        %s116 = ssub.s32 %s15, 1
        // Predicated region
        $region13: #{tpu_custom_call.1} parent=11 // pred_check
          %p117 = pneg %p48
        $region14: #{tpu_custom_call.1} parent=11 // pred_check_branch
          %119 = sbr.rel (%p117) target = $region16
        $region15: #{tpu_custom_call.1} parent=11 // pred_region
          %s121 = ssub.s32 64, 64
          %122 = vsyncadd [#allocation8], %s121
          %s124 = sshll.u32 [#allocation7], 4
          %s125 = int_to_ptr.vmem [resolvable:$true] %s124
          %127 = dma.hbm_to_vmem [thread:$0]  %s0, 64, %s125, [#allocation8]
        $region16: #{tpu_custom_call.1} parent=11 // pred_fallthru
          _
      $region12: #{tpu_custom_call.1} parent=5 // pred_fallthru
        _
      %p128 = scmp.lt.s32.totalorder %s15, 3
      // Predicated region
      $region17: #{tpu_custom_call.1} parent=5 // pred_check
        %p129 = pneg %p128
      $region18: #{tpu_custom_call.1} parent=5 // pred_check_branch
        %131 = sbr.rel (%p129) target = $region20
      $region19: #{tpu_custom_call.1} parent=5 // pred_region
        // Predicated region
        $region21: #{tpu_custom_call.1} parent=19 // pred_check
          %p132 = pneg %p70
        $region22: #{tpu_custom_call.1} parent=19 // pred_check_branch
          %134 = sbr.rel (%p132) target = $region24
        $region23: #{tpu_custom_call.1} parent=19 // pred_region
          %s135 = sand.u32 %s60, 1
          %s136 = scalar_lea.sflag [#allocation11], %s135
          %s137 = sand.u32 %s60, 1
          %s138 = smul.addr %s137, 32
          %s139 = scalar_lea.vmem [#allocation10], %s138
          %s140 = smul.u32 4, %s23
          %s142 = ssub.s32 512, 512
          %143 = vsyncadd %s136, %s142
          %s144 = sadd.s32 %s22, %s140
          %s145 = smul.addr %s144, 128
          %s146 = scalar_lea.hbm %s1, %s145
          %s147 = sshll.u32 %s139, 4
          %s148 = int_to_ptr.vmem [resolvable:$true] %s147
          %153 = dma.hbm_to_vmem [thread:$0]  %s146, 512, %s148, %s136, 128, 128, 8
        $region24: #{tpu_custom_call.1} parent=19 // pred_fallthru
          _
      $region20: #{tpu_custom_call.1} parent=5 // pred_fallthru
        _
      %p154 = scmp.le.s32.totalorder 1, %s15
      %p155 = scmp.lt.s32.totalorder %s15, 4
      %p156 = pnand %p154, %p155
      %p157 = pneg %p156
      // Predicated region
      $region25: #{tpu_custom_call.1} parent=5 // pred_check
        _
      $region26: #{tpu_custom_call.1} parent=5 // pred_check_branch
        %159 = sbr.rel (%p156) target = $region28
      $region27: #{tpu_custom_call.1} parent=5 // pred_region
        %s160 = ssub.s32 %s15, 1
        // Predicated region
        $region29: #{tpu_custom_call.1} parent=27 // pred_check
          %p161 = pneg %p48
        $region30: #{tpu_custom_call.1} parent=27 // pred_check_branch
          %163 = sbr.rel (%p161) target = $region32
        $region31: #{tpu_custom_call.1} parent=27 // pred_region
          %164 = dma.done [#allocation8], 64
        $region32: #{tpu_custom_call.1} parent=27 // pred_fallthru
          _
        %s165 = sand.u32 %s63, 1
        %s166 = scalar_lea.sflag [#allocation11], %s165
        %s167 = sand.u32 %s63, 1
        %s168 = smul.addr %s167, 32
        %s169 = scalar_lea.vmem [#allocation10], %s168
        // Predicated region
        $region33: #{tpu_custom_call.1} parent=27 // pred_check
          %p170 = pneg %p76
        $region34: #{tpu_custom_call.1} parent=27 // pred_check_branch
          %172 = sbr.rel (%p170) target = $region36
        $region35: #{tpu_custom_call.1} parent=27 // pred_region
          %173 = dma.done %s166, 512
        $region36: #{tpu_custom_call.1} parent=27 // pred_fallthru
          _
        %p174 = pneg %p48
        %p175 = pneg %p45
        %s176 = sand.u32 %s63, 1
        %s177 = scalar_lea.sflag [#allocation11], %s176
        %s178 = sand.u32 %s63, 1
        %s179 = smul.addr %s178, 32
        %s180 = scalar_lea.vmem [#allocation10], %s179
        %p181 = pneg %p76
        %p182 = pneg %p73
        %p183 = pneg %p102
        %p184 = pneg %p99
        %s185 = smul.u32 4, %s25
        %p186 = scmp.eq.s32.totalorder %s25, 0
        // Predicated region
        $region37: #{tpu_custom_call.1} parent=27 // pred_check
          %p187 = pneg %p186
        $region38: #{tpu_custom_call.1} parent=27 // pred_check_branch
          %189 = sbr.rel (%p187) target = $region40
        $region39: #{tpu_custom_call.1} parent=27 // pred_region
          // Predicated region
          $region41: #{tpu_custom_call.1} parent=39 // pred_check
            _
          $region42: #{tpu_custom_call.1} parent=39 // pred_check_branch
            %191 = sbr.rel target = $region44
          $region43: #{tpu_custom_call.1} parent=39 // pred_region
            %192 = sst [smem:[#allocation15]] [#allocation14]
            %193 = sst [smem:[#allocation16]] [#allocation13]
          $region44: #{tpu_custom_call.1} parent=39 // pred_fallthru
            _
          %195 = shalt.err (0)
          %s197 = sshll.u32 [#allocation4], 4
          %s198 = int_to_ptr.vmem [resolvable:$true] %s197
          %200 = dma.hbm_to_vmem [thread:$0]  %s2, 8192, %s198, [#allocation6]
          %s201 = scalar_lea.sflag [#allocation6], 1
          // Predicated region
          $region45: #{tpu_custom_call.1} parent=39 // pred_check
            _
          $region46: #{tpu_custom_call.1} parent=39 // pred_check_branch
            %203 = sbr.rel target = $region48
          $region47: #{tpu_custom_call.1} parent=39 // pred_region
            %204 = sst [smem:[#allocation15]] [#allocation18]
            %205 = sst [smem:[#allocation16]] [#allocation17]
          $region48: #{tpu_custom_call.1} parent=39 // pred_fallthru
            _
          %207 = shalt.err (0)
          %s209 = sshll.u32 [#allocation5], 4
          %s210 = int_to_ptr.vmem [resolvable:$true] %s209
          %212 = dma.hbm_to_vmem [thread:$0]  %s3, 8192, %s210, %s201
          %213 = vst [vmem:[#allocation2] sm:$0xff] 0.0
          %214 = vst [vmem:[#allocation3] sm:$0xff] 0.0
          %s215 = smul.u32 8, 16
          %s216 = smul.u32 %s215, 4
          %s217 = sshll.u32 %s216, 4
          %218 = dma.done [#allocation6], %s217
          %s219 = sshll.u32 %s216, 4
          %220 = dma.done %s201, %s219
        $region40: #{tpu_custom_call.1} parent=27 // pred_fallthru
          _
        %v221 = vld [vmem:[%s169] sm:$0xff]
        %v222 = vld [vmem:[%s169 + $0x8] sm:$0xff]
        %v223 = vld [vmem:[%s169 + $0x10] sm:$0xff]
        %v224 = vld [vmem:[%s169 + $0x18] sm:$0xff]
        %v225 = vld [vmem:[#allocation4] sm:$0xff]
        %v226 = vld [vmem:[#allocation4 + $0x8] sm:$0xff]
        %v227 = vld [vmem:[#allocation4 + $0x10] sm:$0xff]
        %v228 = vld [vmem:[#allocation4 + $0x18] sm:$0xff]
        %v229 = vld [vmem:[#allocation4 + $0x20] sm:$0xff]
        %v230 = vld [vmem:[#allocation4 + $0x28] sm:$0xff]
        %v231 = vld [vmem:[#allocation4 + $0x30] sm:$0xff]
        %v232 = vld [vmem:[#allocation4 + $0x38] sm:$0xff]
        %v233 = vld [vmem:[#allocation4 + $0x40] sm:$0xff]
        %v234 = vld [vmem:[#allocation4 + $0x48] sm:$0xff]
        %v235 = vld [vmem:[#allocation4 + $0x50] sm:$0xff]
        %v236 = vld [vmem:[#allocation4 + $0x58] sm:$0xff]
        %v237 = vld [vmem:[#allocation4 + $0x60] sm:$0xff]
        %v238 = vld [vmem:[#allocation4 + $0x68] sm:$0xff]
        %v239 = vld [vmem:[#allocation4 + $0x70] sm:$0xff]
        %v240 = vld [vmem:[#allocation4 + $0x78] sm:$0xff]
        %v241 = vld [vmem:[#allocation4 + $0x80] sm:$0xff]
        %v242 = vld [vmem:[#allocation4 + $0x88] sm:$0xff]
        %v243 = vld [vmem:[#allocation4 + $0x90] sm:$0xff]
        %v244 = vld [vmem:[#allocation4 + $0x98] sm:$0xff]
        %v245 = vld [vmem:[#allocation4 + $0xa0] sm:$0xff]
        %v246 = vld [vmem:[#allocation4 + $0xa8] sm:$0xff]
        %v247 = vld [vmem:[#allocation4 + $0xb0] sm:$0xff]
        %v248 = vld [vmem:[#allocation4 + $0xb8] sm:$0xff]
        %v249 = vld [vmem:[#allocation4 + $0xc0] sm:$0xff]
        %v250 = vld [vmem:[#allocation4 + $0xc8] sm:$0xff]
        %v251 = vld [vmem:[#allocation4 + $0xd0] sm:$0xff]
        %v252 = vld [vmem:[#allocation4 + $0xd8] sm:$0xff]
        %v253 = vld [vmem:[#allocation4 + $0xe0] sm:$0xff]
        %v254 = vld [vmem:[#allocation4 + $0xe8] sm:$0xff]
        %v255 = vld [vmem:[#allocation4 + $0xf0] sm:$0xff]
        %v256 = vld [vmem:[#allocation4 + $0xf8] sm:$0xff]
        %v257 = vld [vmem:[#allocation4 + $0x100] sm:$0xff]
        %v258 = vld [vmem:[#allocation4 + $0x108] sm:$0xff]
        %v259 = vld [vmem:[#allocation4 + $0x110] sm:$0xff]
        %v260 = vld [vmem:[#allocation4 + $0x118] sm:$0xff]
        %v261 = vld [vmem:[#allocation4 + $0x120] sm:$0xff]
        %v262 = vld [vmem:[#allocation4 + $0x128] sm:$0xff]
        %v263 = vld [vmem:[#allocation4 + $0x130] sm:$0xff]
        %v264 = vld [vmem:[#allocation4 + $0x138] sm:$0xff]
        %v265 = vld [vmem:[#allocation4 + $0x140] sm:$0xff]
        %v266 = vld [vmem:[#allocation4 + $0x148] sm:$0xff]
        %v267 = vld [vmem:[#allocation4 + $0x150] sm:$0xff]
        %v268 = vld [vmem:[#allocation4 + $0x158] sm:$0xff]
        %v269 = vld [vmem:[#allocation4 + $0x160] sm:$0xff]
        %v270 = vld [vmem:[#allocation4 + $0x168] sm:$0xff]
        %v271 = vld [vmem:[#allocation4 + $0x170] sm:$0xff]
        %v272 = vld [vmem:[#allocation4 + $0x178] sm:$0xff]
        %v273 = vld [vmem:[#allocation4 + $0x180] sm:$0xff]
        %v274 = vld [vmem:[#allocation4 + $0x188] sm:$0xff]
        %v275 = vld [vmem:[#allocation4 + $0x190] sm:$0xff]
        %v276 = vld [vmem:[#allocation4 + $0x198] sm:$0xff]
        %v277 = vld [vmem:[#allocation4 + $0x1a0] sm:$0xff]
        %v278 = vld [vmem:[#allocation4 + $0x1a8] sm:$0xff]
        %v279 = vld [vmem:[#allocation4 + $0x1b0] sm:$0xff]
        %v280 = vld [vmem:[#allocation4 + $0x1b8] sm:$0xff]
        %v281 = vld [vmem:[#allocation4 + $0x1c0] sm:$0xff]
        %v282 = vld [vmem:[#allocation4 + $0x1c8] sm:$0xff]
        %v283 = vld [vmem:[#allocation4 + $0x1d0] sm:$0xff]
        %v284 = vld [vmem:[#allocation4 + $0x1d8] sm:$0xff]
        %v285 = vld [vmem:[#allocation4 + $0x1e0] sm:$0xff]
        %v286 = vld [vmem:[#allocation4 + $0x1e8] sm:$0xff]
        %v287 = vld [vmem:[#allocation4 + $0x1f0] sm:$0xff]
        %v288 = vld [vmem:[#allocation4 + $0x1f8] sm:$0xff]
        %v289 = vld [vmem:[#allocation7] sm:$0xf]
        %v291 = vlaneseq
        %v292 = vshrl.u32 %v291, 7
        %v293 = vsub.s32 0, %v292
        %v294 = vrot.slane %v289, %v293
        %v295 = vlaneseq
        %v296 = vshrl.u32 %v295, 7
        %v297 = vsub.s32 1, %v296
        %v298 = vrot.slane %v289, %v297
        %v299 = vlaneseq
        %v300 = vshrl.u32 %v299, 7
        %v301 = vsub.s32 2, %v300
        %v302 = vrot.slane %v289, %v301
        %v303 = vlaneseq
        %v304 = vshrl.u32 %v303, 7
        %v305 = vsub.s32 3, %v304
        %v306 = vrot.slane %v289, %v305
        %311 = vmatprep.subr.mxu0 %v226
        %312 = vmatpush1.msra.mxu0 %v225
        %313 = vmatprep.subr.mxu0 %v230
        %314 = vmatpush1.msra.mxu0 %v229
        %315 = vmatprep.subr.mxu0 %v234
        %316 = vmatpush1.msra.mxu0 %v233
        %317 = vmatprep.subr.mxu0 %v238
        %318 = vmatpush1.msra.mxu0 %v237
        %319 = vmatprep.subr.mxu0 %v242
        %320 = vmatpush1.msra.mxu0 %v241
        %321 = vmatprep.subr.mxu0 %v246
        %322 = vmatpush1.msra.mxu0 %v245
        %323 = vmatprep.subr.mxu0 %v250
        %324 = vmatpush1.msra.mxu0 %v249
        %325 = vmatprep.subr.mxu0 %v254
        %326 = vmatpush1.msra.mxu0 %v253
        %327 = vmatprep.subr.mxu0 %v258
        %328 = vmatpush1.msra.mxu0 %v257
        %329 = vmatprep.subr.mxu0 %v262
        %330 = vmatpush1.msra.mxu0 %v261
        %331 = vmatprep.subr.mxu0 %v266
        %332 = vmatpush1.msra.mxu0 %v265
        %333 = vmatprep.subr.mxu0 %v270
        %334 = vmatpush1.msra.mxu0 %v269
        %335 = vmatprep.subr.mxu0 %v274
        %336 = vmatpush1.msra.mxu0 %v273
        %337 = vmatprep.subr.mxu0 %v278
        %338 = vmatpush1.msra.mxu0 %v277
        %339 = vmatprep.subr.mxu0 %v282
        %340 = vmatpush1.msra.mxu0 %v281
        %341 = vmatprep.subr.mxu0 %v286
        %342 = vmatpush1.msra.mxu0 %v285
        %343 = vmatprep.subr.mxu0 0.0
        %344 = vmatpush1.msra.mxu0 0.0
        %345 = vmatprep.subr.mxu0 0.0
        %346 = vmatpush1.msra.mxu0 0.0
        %347 = vmatprep.subr.mxu0 0.0
        %348 = vmatpush1.msra.mxu0 0.0
        %349 = vmatprep.subr.mxu0 0.0
        %350 = vmatpush1.msra.mxu0 0.0
        %351 = vmatprep.subr.mxu0 0.0
        %352 = vmatpush1.msra.mxu0 0.0
        %353 = vmatprep.subr.mxu0 0.0
        %354 = vmatpush1.msra.mxu0 0.0
        %355 = vmatprep.subr.mxu0 0.0
        %356 = vmatpush1.msra.mxu0 0.0
        %357 = vmatprep.subr.mxu0 0.0
        %358 = vmatpush1.msra.mxu0 0.0
        %359 = vmatprep.subr.mxu0 0.0
        %360 = vmatpush1.msra.mxu0 0.0
        %361 = vmatprep.subr.mxu0 0.0
        %362 = vmatpush1.msra.mxu0 0.0
        %363 = vmatprep.subr.mxu0 0.0
        %364 = vmatpush1.msra.mxu0 0.0
        %365 = vmatprep.subr.mxu0 0.0
        %366 = vmatpush1.msra.mxu0 0.0
        %367 = vmatprep.subr.mxu0 0.0
        %368 = vmatpush1.msra.mxu0 0.0
        %369 = vmatprep.subr.mxu0 0.0
        %370 = vmatpush1.msra.mxu0 0.0
        %371 = vmatprep.subr.mxu0 0.0
        %372 = vmatpush1.msra.mxu0 0.0
        %373 = vmatprep.subr.mxu0 0.0
        %374 = vmatpush1.msra.mxu0 0.0
        %375 = vmatprep.mubr.f32.mxu0 0.0
        %376 = vmatmul.mubr.f32.gmra.mrb[0].mxu0 %v221
        %v377 = vpop.f32.mrb[0].mxu0
        %v378 = vadd.f32 %v294, %v377
        %v379 = vpop.f32.mrb[0].mxu0
        %v380 = vadd.f32 %v298, %v379
        %381 = vmatprep.mubr.f32.mxu0 0.0
        %382 = vmatmul.mubr.f32.gmra.mrb[0].mxu0 %v222
        %v383 = vpop.f32.mrb[0].mxu0
        %v384 = vadd.f32 %v294, %v383
        %v385 = vpop.f32.mrb[0].mxu0
        %v386 = vadd.f32 %v298, %v385
        %387 = vmatprep.mubr.f32.mxu0 0.0
        %388 = vmatmul.mubr.f32.gmra.mrb[0].mxu0 %v223
        %v389 = vpop.f32.mrb[0].mxu0
        %v390 = vadd.f32 %v294, %v389
        %v391 = vpop.f32.mrb[0].mxu0
        %v392 = vadd.f32 %v298, %v391
        %393 = vmatprep.mubr.f32.mxu0 0.0
        %394 = vmatmul.mubr.f32.gmra.mrb[0].mxu0 %v224
        %v395 = vpop.f32.mrb[0].mxu0
        %v396 = vadd.f32 %v294, %v395
        %v397 = vpop.f32.mrb[0].mxu0
        %v398 = vadd.f32 %v298, %v397
        %399 = vdwg.mxu0
        %400 = vmatprep.subr.mxu0 %v228
        %401 = vmatpush1.msra.mxu0 %v227
        %402 = vmatprep.subr.mxu0 %v232
        %403 = vmatpush1.msra.mxu0 %v231
        %404 = vmatprep.subr.mxu0 %v236
        %405 = vmatpush1.msra.mxu0 %v235
        %406 = vmatprep.subr.mxu0 %v240
        %407 = vmatpush1.msra.mxu0 %v239
        %408 = vmatprep.subr.mxu0 %v244
        %409 = vmatpush1.msra.mxu0 %v243
        %410 = vmatprep.subr.mxu0 %v248
        %411 = vmatpush1.msra.mxu0 %v247
        %412 = vmatprep.subr.mxu0 %v252
        %413 = vmatpush1.msra.mxu0 %v251
        %414 = vmatprep.subr.mxu0 %v256
        %415 = vmatpush1.msra.mxu0 %v255
        %416 = vmatprep.subr.mxu0 %v260
        %417 = vmatpush1.msra.mxu0 %v259
        %418 = vmatprep.subr.mxu0 %v264
        %419 = vmatpush1.msra.mxu0 %v263
        %420 = vmatprep.subr.mxu0 %v268
        %421 = vmatpush1.msra.mxu0 %v267
        %422 = vmatprep.subr.mxu0 %v272
        %423 = vmatpush1.msra.mxu0 %v271
        %424 = vmatprep.subr.mxu0 %v276
        %425 = vmatpush1.msra.mxu0 %v275
        %426 = vmatprep.subr.mxu0 %v280
        %427 = vmatpush1.msra.mxu0 %v279
        %428 = vmatprep.subr.mxu0 %v284
        %429 = vmatpush1.msra.mxu0 %v283
        %430 = vmatprep.subr.mxu0 %v288
        %431 = vmatpush1.msra.mxu0 %v287
        %432 = vmatprep.subr.mxu0 0.0
        %433 = vmatpush1.msra.mxu0 0.0
        %434 = vmatprep.subr.mxu0 0.0
        %435 = vmatpush1.msra.mxu0 0.0
        %436 = vmatprep.subr.mxu0 0.0
        %437 = vmatpush1.msra.mxu0 0.0
        %438 = vmatprep.subr.mxu0 0.0
        %439 = vmatpush1.msra.mxu0 0.0
        %440 = vmatprep.subr.mxu0 0.0
        %441 = vmatpush1.msra.mxu0 0.0
        %442 = vmatprep.subr.mxu0 0.0
        %443 = vmatpush1.msra.mxu0 0.0
        %444 = vmatprep.subr.mxu0 0.0
        %445 = vmatpush1.msra.mxu0 0.0
        %446 = vmatprep.subr.mxu0 0.0
        %447 = vmatpush1.msra.mxu0 0.0
        %448 = vmatprep.subr.mxu0 0.0
        %449 = vmatpush1.msra.mxu0 0.0
        %450 = vmatprep.subr.mxu0 0.0
        %451 = vmatpush1.msra.mxu0 0.0
        %452 = vmatprep.subr.mxu0 0.0
        %453 = vmatpush1.msra.mxu0 0.0
        %454 = vmatprep.subr.mxu0 0.0
        %455 = vmatpush1.msra.mxu0 0.0
        %456 = vmatprep.subr.mxu0 0.0
        %457 = vmatpush1.msra.mxu0 0.0
        %458 = vmatprep.subr.mxu0 0.0
        %459 = vmatpush1.msra.mxu0 0.0
        %460 = vmatprep.subr.mxu0 0.0
        %461 = vmatpush1.msra.mxu0 0.0
        %462 = vmatprep.subr.mxu0 0.0
        %463 = vmatpush1.msra.mxu0 0.0
        %464 = vmatprep.mubr.f32.mxu0 0.0
        %465 = vmatmul.mubr.f32.gmra.mrb[0].mxu0 %v221
        %v466 = vpop.f32.mrb[0].mxu0
        %v467 = vadd.f32 %v302, %v466
        %v468 = vpop.f32.mrb[0].mxu0
        %v469 = vadd.f32 %v306, %v468
        %470 = vmatprep.mubr.f32.mxu0 0.0
        %471 = vmatmul.mubr.f32.gmra.mrb[0].mxu0 %v222
        %v472 = vpop.f32.mrb[0].mxu0
        %v473 = vadd.f32 %v302, %v472
        %v474 = vpop.f32.mrb[0].mxu0
        %v475 = vadd.f32 %v306, %v474
        %476 = vmatprep.mubr.f32.mxu0 0.0
        %477 = vmatmul.mubr.f32.gmra.mrb[0].mxu0 %v223
        %v478 = vpop.f32.mrb[0].mxu0
        %v479 = vadd.f32 %v302, %v478
        %v480 = vpop.f32.mrb[0].mxu0
        %v481 = vadd.f32 %v306, %v480
        %482 = vmatprep.mubr.f32.mxu0 0.0
        %483 = vmatmul.mubr.f32.gmra.mrb[0].mxu0 %v224
        %v484 = vpop.f32.mrb[0].mxu0
        %v485 = vadd.f32 %v302, %v484
        %v486 = vpop.f32.mrb[0].mxu0
        %v487 = vadd.f32 %v306, %v486
        %488 = vdwg.mxu0
        %v489 = vld [vmem:[#allocation2] sm:$0xff]
        %v490 = vld [vmem:[#allocation3] sm:$0xff]
        %v491 = vld [vmem:[#allocation5] sm:$0xff]
        %v492 = vld [vmem:[#allocation5 + $0x8] sm:$0xff]
        %v493 = vld [vmem:[#allocation5 + $0x10] sm:$0xff]
        %v494 = vld [vmem:[#allocation5 + $0x18] sm:$0xff]
        %v495 = vld [vmem:[#allocation5 + $0x20] sm:$0xff]
        %v496 = vld [vmem:[#allocation5 + $0x28] sm:$0xff]
        %v497 = vld [vmem:[#allocation5 + $0x30] sm:$0xff]
        %v498 = vld [vmem:[#allocation5 + $0x38] sm:$0xff]
        %v499 = vld [vmem:[#allocation5 + $0x40] sm:$0xff]
        %v500 = vld [vmem:[#allocation5 + $0x48] sm:$0xff]
        %v501 = vld [vmem:[#allocation5 + $0x50] sm:$0xff]
        %v502 = vld [vmem:[#allocation5 + $0x58] sm:$0xff]
        %v503 = vld [vmem:[#allocation5 + $0x60] sm:$0xff]
        %v504 = vld [vmem:[#allocation5 + $0x68] sm:$0xff]
        %v505 = vld [vmem:[#allocation5 + $0x70] sm:$0xff]
        %v506 = vld [vmem:[#allocation5 + $0x78] sm:$0xff]
        %v507 = vld [vmem:[#allocation5 + $0x80] sm:$0xff]
        %v508 = vld [vmem:[#allocation5 + $0x88] sm:$0xff]
        %v509 = vld [vmem:[#allocation5 + $0x90] sm:$0xff]
        %v510 = vld [vmem:[#allocation5 + $0x98] sm:$0xff]
        %v511 = vld [vmem:[#allocation5 + $0xa0] sm:$0xff]
        %v512 = vld [vmem:[#allocation5 + $0xa8] sm:$0xff]
        %v513 = vld [vmem:[#allocation5 + $0xb0] sm:$0xff]
        %v514 = vld [vmem:[#allocation5 + $0xb8] sm:$0xff]
        %v515 = vld [vmem:[#allocation5 + $0xc0] sm:$0xff]
        %v516 = vld [vmem:[#allocation5 + $0xc8] sm:$0xff]
        %v517 = vld [vmem:[#allocation5 + $0xd0] sm:$0xff]
        %v518 = vld [vmem:[#allocation5 + $0xd8] sm:$0xff]
        %v519 = vld [vmem:[#allocation5 + $0xe0] sm:$0xff]
        %v520 = vld [vmem:[#allocation5 + $0xe8] sm:$0xff]
        %v521 = vld [vmem:[#allocation5 + $0xf0] sm:$0xff]
        %v522 = vld [vmem:[#allocation5 + $0xf8] sm:$0xff]
        %v523 = vld [vmem:[#allocation5 + $0x100] sm:$0xff]
        %v524 = vld [vmem:[#allocation5 + $0x108] sm:$0xff]
        %v525 = vld [vmem:[#allocation5 + $0x110] sm:$0xff]
        %v526 = vld [vmem:[#allocation5 + $0x118] sm:$0xff]
        %v527 = vld [vmem:[#allocation5 + $0x120] sm:$0xff]
        %v528 = vld [vmem:[#allocation5 + $0x128] sm:$0xff]
        %v529 = vld [vmem:[#allocation5 + $0x130] sm:$0xff]
        %v530 = vld [vmem:[#allocation5 + $0x138] sm:$0xff]
        %v531 = vld [vmem:[#allocation5 + $0x140] sm:$0xff]
        %v532 = vld [vmem:[#allocation5 + $0x148] sm:$0xff]
        %v533 = vld [vmem:[#allocation5 + $0x150] sm:$0xff]
        %v534 = vld [vmem:[#allocation5 + $0x158] sm:$0xff]
        %v535 = vld [vmem:[#allocation5 + $0x160] sm:$0xff]
        %v536 = vld [vmem:[#allocation5 + $0x168] sm:$0xff]
        %v537 = vld [vmem:[#allocation5 + $0x170] sm:$0xff]
        %v538 = vld [vmem:[#allocation5 + $0x178] sm:$0xff]
        %v539 = vld [vmem:[#allocation5 + $0x180] sm:$0xff]
        %v540 = vld [vmem:[#allocation5 + $0x188] sm:$0xff]
        %v541 = vld [vmem:[#allocation5 + $0x190] sm:$0xff]
        %v542 = vld [vmem:[#allocation5 + $0x198] sm:$0xff]
        %v543 = vld [vmem:[#allocation5 + $0x1a0] sm:$0xff]
        %v544 = vld [vmem:[#allocation5 + $0x1a8] sm:$0xff]
        %v545 = vld [vmem:[#allocation5 + $0x1b0] sm:$0xff]
        %v546 = vld [vmem:[#allocation5 + $0x1b8] sm:$0xff]
        %v547 = vld [vmem:[#allocation5 + $0x1c0] sm:$0xff]
        %v548 = vld [vmem:[#allocation5 + $0x1c8] sm:$0xff]
        %v549 = vld [vmem:[#allocation5 + $0x1d0] sm:$0xff]
        %v550 = vld [vmem:[#allocation5 + $0x1d8] sm:$0xff]
        %v551 = vld [vmem:[#allocation5 + $0x1e0] sm:$0xff]
        %v552 = vld [vmem:[#allocation5 + $0x1e8] sm:$0xff]
        %v553 = vld [vmem:[#allocation5 + $0x1f0] sm:$0xff]
        %v554 = vld [vmem:[#allocation5 + $0x1f8] sm:$0xff]
        %555 = vmatprep.subr.mxu0 %v492
        %556 = vmatpush1.msra.mxu0 %v491
        %557 = vmatprep.subr.mxu0 %v496
        %558 = vmatpush1.msra.mxu0 %v495
        %559 = vmatprep.subr.mxu0 %v500
        %560 = vmatpush1.msra.mxu0 %v499
        %561 = vmatprep.subr.mxu0 %v504
        %562 = vmatpush1.msra.mxu0 %v503
        %563 = vmatprep.subr.mxu0 %v508
        %564 = vmatpush1.msra.mxu0 %v507
        %565 = vmatprep.subr.mxu0 %v512
        %566 = vmatpush1.msra.mxu0 %v511
        %567 = vmatprep.subr.mxu0 %v516
        %568 = vmatpush1.msra.mxu0 %v515
        %569 = vmatprep.subr.mxu0 %v520
        %570 = vmatpush1.msra.mxu0 %v519
        %571 = vmatprep.subr.mxu0 %v524
        %572 = vmatpush1.msra.mxu0 %v523
        %573 = vmatprep.subr.mxu0 %v528
        %574 = vmatpush1.msra.mxu0 %v527
        %575 = vmatprep.subr.mxu0 %v532
        %576 = vmatpush1.msra.mxu0 %v531
        %577 = vmatprep.subr.mxu0 %v536
        %578 = vmatpush1.msra.mxu0 %v535
        %579 = vmatprep.subr.mxu0 %v540
        %580 = vmatpush1.msra.mxu0 %v539
        %581 = vmatprep.subr.mxu0 %v544
        %582 = vmatpush1.msra.mxu0 %v543
        %583 = vmatprep.subr.mxu0 %v548
        %584 = vmatpush1.msra.mxu0 %v547
        %585 = vmatprep.subr.mxu0 %v552
        %586 = vmatpush1.msra.mxu0 %v551
        %587 = vmatprep.subr.mxu0 0.0
        %588 = vmatpush1.msra.mxu0 0.0
        %589 = vmatprep.subr.mxu0 0.0
        %590 = vmatpush1.msra.mxu0 0.0
        %591 = vmatprep.subr.mxu0 0.0
        %592 = vmatpush1.msra.mxu0 0.0
        %593 = vmatprep.subr.mxu0 0.0
        %594 = vmatpush1.msra.mxu0 0.0
        %595 = vmatprep.subr.mxu0 0.0
        %596 = vmatpush1.msra.mxu0 0.0
        %597 = vmatprep.subr.mxu0 0.0
        %598 = vmatpush1.msra.mxu0 0.0
        %599 = vmatprep.subr.mxu0 0.0
        %600 = vmatpush1.msra.mxu0 0.0
        %601 = vmatprep.subr.mxu0 0.0
        %602 = vmatpush1.msra.mxu0 0.0
        %603 = vmatprep.subr.mxu0 0.0
        %604 = vmatpush1.msra.mxu0 0.0
        %605 = vmatprep.subr.mxu0 0.0
        %606 = vmatpush1.msra.mxu0 0.0
        %607 = vmatprep.subr.mxu0 0.0
        %608 = vmatpush1.msra.mxu0 0.0
        %609 = vmatprep.subr.mxu0 0.0
        %610 = vmatpush1.msra.mxu0 0.0
        %611 = vmatprep.subr.mxu0 0.0
        %612 = vmatpush1.msra.mxu0 0.0
        %613 = vmatprep.subr.mxu0 0.0
        %614 = vmatpush1.msra.mxu0 0.0
        %615 = vmatprep.subr.mxu0 0.0
        %616 = vmatpush1.msra.mxu0 0.0
        %617 = vmatprep.subr.mxu0 0.0
        %618 = vmatpush1.msra.mxu0 0.0
        %619 = vmatprep.mubr.f32.mxu0 0.0
        %620 = vmatmul.mubr.f32.gmra.mrb[0].mxu0 %v489
        %v621 = vpop.f32.mrb[0].mxu0
        %v622 = vadd.f32 0.0, %v621
        %v623 = vpop.f32.mrb[0].mxu0
        %v624 = vadd.f32 0.0, %v623
        %625 = vdwg.mxu0
        %626 = vmatprep.subr.mxu0 %v494
        %627 = vmatpush1.msra.mxu0 %v493
        %628 = vmatprep.subr.mxu0 %v498
        %629 = vmatpush1.msra.mxu0 %v497
        %630 = vmatprep.subr.mxu0 %v502
        %631 = vmatpush1.msra.mxu0 %v501
        %632 = vmatprep.subr.mxu0 %v506
        %633 = vmatpush1.msra.mxu0 %v505
        %634 = vmatprep.subr.mxu0 %v510
        %635 = vmatpush1.msra.mxu0 %v509
        %636 = vmatprep.subr.mxu0 %v514
        %637 = vmatpush1.msra.mxu0 %v513
        %638 = vmatprep.subr.mxu0 %v518
        %639 = vmatpush1.msra.mxu0 %v517
        %640 = vmatprep.subr.mxu0 %v522
        %641 = vmatpush1.msra.mxu0 %v521
        %642 = vmatprep.subr.mxu0 %v526
        %643 = vmatpush1.msra.mxu0 %v525
        %644 = vmatprep.subr.mxu0 %v530
        %645 = vmatpush1.msra.mxu0 %v529
        %646 = vmatprep.subr.mxu0 %v534
        %647 = vmatpush1.msra.mxu0 %v533
        %648 = vmatprep.subr.mxu0 %v538
        %649 = vmatpush1.msra.mxu0 %v537
        %650 = vmatprep.subr.mxu0 %v542
        %651 = vmatpush1.msra.mxu0 %v541
        %652 = vmatprep.subr.mxu0 %v546
        %653 = vmatpush1.msra.mxu0 %v545
        %654 = vmatprep.subr.mxu0 %v550
        %655 = vmatpush1.msra.mxu0 %v549
        %656 = vmatprep.subr.mxu0 %v554
        %657 = vmatpush1.msra.mxu0 %v553
        %658 = vmatprep.subr.mxu0 0.0
        %659 = vmatpush1.msra.mxu0 0.0
        %660 = vmatprep.subr.mxu0 0.0
        %661 = vmatpush1.msra.mxu0 0.0
        %662 = vmatprep.subr.mxu0 0.0
        %663 = vmatpush1.msra.mxu0 0.0
        %664 = vmatprep.subr.mxu0 0.0
        %665 = vmatpush1.msra.mxu0 0.0
        %666 = vmatprep.subr.mxu0 0.0
        %667 = vmatpush1.msra.mxu0 0.0
        %668 = vmatprep.subr.mxu0 0.0
        %669 = vmatpush1.msra.mxu0 0.0
        %670 = vmatprep.subr.mxu0 0.0
        %671 = vmatpush1.msra.mxu0 0.0
        %672 = vmatprep.subr.mxu0 0.0
        %673 = vmatpush1.msra.mxu0 0.0
        %674 = vmatprep.subr.mxu0 0.0
        %675 = vmatpush1.msra.mxu0 0.0
        %676 = vmatprep.subr.mxu0 0.0
        %677 = vmatpush1.msra.mxu0 0.0
        %678 = vmatprep.subr.mxu0 0.0
        %679 = vmatpush1.msra.mxu0 0.0
        %680 = vmatprep.subr.mxu0 0.0
        %681 = vmatpush1.msra.mxu0 0.0
        %682 = vmatprep.subr.mxu0 0.0
        %683 = vmatpush1.msra.mxu0 0.0
        %684 = vmatprep.subr.mxu0 0.0
        %685 = vmatpush1.msra.mxu0 0.0
        %686 = vmatprep.subr.mxu0 0.0
        %687 = vmatpush1.msra.mxu0 0.0
        %688 = vmatprep.subr.mxu0 0.0
        %689 = vmatpush1.msra.mxu0 0.0
        %690 = vmatprep.mubr.f32.mxu0 0.0
        %691 = vmatmul.mubr.f32.gmra.mrb[0].mxu0 %v489
        %v692 = vpop.f32.mrb[0].mxu0
        %v693 = vadd.f32 0.0, %v692
        %v694 = vpop.f32.mrb[0].mxu0
        %v695 = vadd.f32 0.0, %v694
        %696 = vdwg.mxu0
        %v697 = vadd.f32 %v378, %v622
        %v698 = vadd.f32 %v380, %v624
        %v699 = vadd.f32 %v467, %v693
        %v700 = vadd.f32 %v469, %v695
        %v701 = vmul.f32 %v697, 0.5
        %v702 = vtanh.pop %v701
        %v703 = vadd.f32 %v702, 1.0
        %v704 = vmul.f32 %v703, 0.5
        %v705 = vmul.f32 %v698, 0.5
        %v706 = vtanh.pop %v705
        %v707 = vadd.f32 %v706, 1.0
        %v708 = vmul.f32 %v707, 0.5
        %v709 = vtanh.pop %v699
        %v710 = vmul.f32 %v700, 0.5
        %v711 = vtanh.pop %v710
        %v712 = vadd.f32 %v711, 1.0
        %v713 = vmul.f32 %v712, 0.5
        %v714 = vmul.f32 %v708, %v490
        %v715 = vmul.f32 %v704, %v709
        %v716 = vadd.f32 %v714, %v715
        %v717 = vtanh.pop %v716
        %v718 = vmul.f32 %v713, %v717
        %719 = vmatprep.subr.mxu0 %v492
        %720 = vmatpush1.msra.mxu0 %v491
        %721 = vmatprep.subr.mxu0 %v496
        %722 = vmatpush1.msra.mxu0 %v495
        %723 = vmatprep.subr.mxu0 %v500
        %724 = vmatpush1.msra.mxu0 %v499
        %725 = vmatprep.subr.mxu0 %v504
        %726 = vmatpush1.msra.mxu0 %v503
        %727 = vmatprep.subr.mxu0 %v508
        %728 = vmatpush1.msra.mxu0 %v507
        %729 = vmatprep.subr.mxu0 %v512
        %730 = vmatpush1.msra.mxu0 %v511
        %731 = vmatprep.subr.mxu0 %v516
        %732 = vmatpush1.msra.mxu0 %v515
        %733 = vmatprep.subr.mxu0 %v520
        %734 = vmatpush1.msra.mxu0 %v519
        %735 = vmatprep.subr.mxu0 %v524
        %736 = vmatpush1.msra.mxu0 %v523
        %737 = vmatprep.subr.mxu0 %v528
        %738 = vmatpush1.msra.mxu0 %v527
        %739 = vmatprep.subr.mxu0 %v532
        %740 = vmatpush1.msra.mxu0 %v531
        %741 = vmatprep.subr.mxu0 %v536
        %742 = vmatpush1.msra.mxu0 %v535
        %743 = vmatprep.subr.mxu0 %v540
        %744 = vmatpush1.msra.mxu0 %v539
        %745 = vmatprep.subr.mxu0 %v544
        %746 = vmatpush1.msra.mxu0 %v543
        %747 = vmatprep.subr.mxu0 %v548
        %748 = vmatpush1.msra.mxu0 %v547
        %749 = vmatprep.subr.mxu0 %v552
        %750 = vmatpush1.msra.mxu0 %v551
        %751 = vmatprep.subr.mxu0 0.0
        %752 = vmatpush1.msra.mxu0 0.0
        %753 = vmatprep.subr.mxu0 0.0
        %754 = vmatpush1.msra.mxu0 0.0
        %755 = vmatprep.subr.mxu0 0.0
        %756 = vmatpush1.msra.mxu0 0.0
        %757 = vmatprep.subr.mxu0 0.0
        %758 = vmatpush1.msra.mxu0 0.0
        %759 = vmatprep.subr.mxu0 0.0
        %760 = vmatpush1.msra.mxu0 0.0
        %761 = vmatprep.subr.mxu0 0.0
        %762 = vmatpush1.msra.mxu0 0.0
        %763 = vmatprep.subr.mxu0 0.0
        %764 = vmatpush1.msra.mxu0 0.0
        %765 = vmatprep.subr.mxu0 0.0
        %766 = vmatpush1.msra.mxu0 0.0
        %767 = vmatprep.subr.mxu0 0.0
        %768 = vmatpush1.msra.mxu0 0.0
        %769 = vmatprep.subr.mxu0 0.0
        %770 = vmatpush1.msra.mxu0 0.0
        %771 = vmatprep.subr.mxu0 0.0
        %772 = vmatpush1.msra.mxu0 0.0
        %773 = vmatprep.subr.mxu0 0.0
        %774 = vmatpush1.msra.mxu0 0.0
        %775 = vmatprep.subr.mxu0 0.0
        %776 = vmatpush1.msra.mxu0 0.0
        %777 = vmatprep.subr.mxu0 0.0
        %778 = vmatpush1.msra.mxu0 0.0
        %779 = vmatprep.subr.mxu0 0.0
        %780 = vmatpush1.msra.mxu0 0.0
        %781 = vmatprep.subr.mxu0 0.0
        %782 = vmatpush1.msra.mxu0 0.0
        %783 = vmatprep.mubr.f32.mxu0 0.0
        %784 = vmatmul.mubr.f32.gmra.mrb[0].mxu0 %v718
        %v785 = vpop.f32.mrb[0].mxu0
        %v786 = vadd.f32 0.0, %v785
        %v787 = vpop.f32.mrb[0].mxu0
        %v788 = vadd.f32 0.0, %v787
        %789 = vdwg.mxu0
        %790 = vmatprep.subr.mxu0 %v494
        %791 = vmatpush1.msra.mxu0 %v493
        %792 = vmatprep.subr.mxu0 %v498
        %793 = vmatpush1.msra.mxu0 %v497
        %794 = vmatprep.subr.mxu0 %v502
        %795 = vmatpush1.msra.mxu0 %v501
        %796 = vmatprep.subr.mxu0 %v506
        %797 = vmatpush1.msra.mxu0 %v505
        %798 = vmatprep.subr.mxu0 %v510
        %799 = vmatpush1.msra.mxu0 %v509
        %800 = vmatprep.subr.mxu0 %v514
        %801 = vmatpush1.msra.mxu0 %v513
        %802 = vmatprep.subr.mxu0 %v518
        %803 = vmatpush1.msra.mxu0 %v517
        %804 = vmatprep.subr.mxu0 %v522
        %805 = vmatpush1.msra.mxu0 %v521
        %806 = vmatprep.subr.mxu0 %v526
        %807 = vmatpush1.msra.mxu0 %v525
        %808 = vmatprep.subr.mxu0 %v530
        %809 = vmatpush1.msra.mxu0 %v529
        %810 = vmatprep.subr.mxu0 %v534
        %811 = vmatpush1.msra.mxu0 %v533
        %812 = vmatprep.subr.mxu0 %v538
        %813 = vmatpush1.msra.mxu0 %v537
        %814 = vmatprep.subr.mxu0 %v542
        %815 = vmatpush1.msra.mxu0 %v541
        %816 = vmatprep.subr.mxu0 %v546
        %817 = vmatpush1.msra.mxu0 %v545
        %818 = vmatprep.subr.mxu0 %v550
        %819 = vmatpush1.msra.mxu0 %v549
        %820 = vmatprep.subr.mxu0 %v554
        %821 = vmatpush1.msra.mxu0 %v553
        %822 = vmatprep.subr.mxu0 0.0
        %823 = vmatpush1.msra.mxu0 0.0
        %824 = vmatprep.subr.mxu0 0.0
        %825 = vmatpush1.msra.mxu0 0.0
        %826 = vmatprep.subr.mxu0 0.0
        %827 = vmatpush1.msra.mxu0 0.0
        %828 = vmatprep.subr.mxu0 0.0
        %829 = vmatpush1.msra.mxu0 0.0
        %830 = vmatprep.subr.mxu0 0.0
        %831 = vmatpush1.msra.mxu0 0.0
        %832 = vmatprep.subr.mxu0 0.0
        %833 = vmatpush1.msra.mxu0 0.0
        %834 = vmatprep.subr.mxu0 0.0
        %835 = vmatpush1.msra.mxu0 0.0
        %836 = vmatprep.subr.mxu0 0.0
        %837 = vmatpush1.msra.mxu0 0.0
        %838 = vmatprep.subr.mxu0 0.0
        %839 = vmatpush1.msra.mxu0 0.0
        %840 = vmatprep.subr.mxu0 0.0
        %841 = vmatpush1.msra.mxu0 0.0
        %842 = vmatprep.subr.mxu0 0.0
        %843 = vmatpush1.msra.mxu0 0.0
        %844 = vmatprep.subr.mxu0 0.0
        %845 = vmatpush1.msra.mxu0 0.0
        %846 = vmatprep.subr.mxu0 0.0
        %847 = vmatpush1.msra.mxu0 0.0
        %848 = vmatprep.subr.mxu0 0.0
        %849 = vmatpush1.msra.mxu0 0.0
        %850 = vmatprep.subr.mxu0 0.0
        %851 = vmatpush1.msra.mxu0 0.0
        %852 = vmatprep.subr.mxu0 0.0
        %853 = vmatpush1.msra.mxu0 0.0
        %854 = vmatprep.mubr.f32.mxu0 0.0
        %855 = vmatmul.mubr.f32.gmra.mrb[0].mxu0 %v718
        %v856 = vpop.f32.mrb[0].mxu0
        %v857 = vadd.f32 0.0, %v856
        %v858 = vpop.f32.mrb[0].mxu0
        %v859 = vadd.f32 0.0, %v858
        %860 = vdwg.mxu0
        %v861 = vadd.f32 %v384, %v786
        %v862 = vadd.f32 %v386, %v788
        %v863 = vadd.f32 %v473, %v857
        %v864 = vadd.f32 %v475, %v859
        %v865 = vmul.f32 %v861, 0.5
        %v866 = vtanh.pop %v865
        %v867 = vadd.f32 %v866, 1.0
        %v868 = vmul.f32 %v867, 0.5
        %v869 = vmul.f32 %v862, 0.5
        %v870 = vtanh.pop %v869
        %v871 = vadd.f32 %v870, 1.0
        %v872 = vmul.f32 %v871, 0.5
        %v873 = vtanh.pop %v863
        %v874 = vmul.f32 %v864, 0.5
        %v875 = vtanh.pop %v874
        %v876 = vadd.f32 %v875, 1.0
        %v877 = vmul.f32 %v876, 0.5
        %v878 = vmul.f32 %v872, %v716
        %v879 = vmul.f32 %v868, %v873
        %v880 = vadd.f32 %v878, %v879
        %v881 = vtanh.pop %v880
        %v882 = vmul.f32 %v877, %v881
        %883 = vmatprep.subr.mxu0 %v492
        %884 = vmatpush1.msra.mxu0 %v491
        %885 = vmatprep.subr.mxu0 %v496
        %886 = vmatpush1.msra.mxu0 %v495
        %887 = vmatprep.subr.mxu0 %v500
        %888 = vmatpush1.msra.mxu0 %v499
        %889 = vmatprep.subr.mxu0 %v504
        %890 = vmatpush1.msra.mxu0 %v503
        %891 = vmatprep.subr.mxu0 %v508
        %892 = vmatpush1.msra.mxu0 %v507
        %893 = vmatprep.subr.mxu0 %v512
        %894 = vmatpush1.msra.mxu0 %v511
        %895 = vmatprep.subr.mxu0 %v516
        %896 = vmatpush1.msra.mxu0 %v515
        %897 = vmatprep.subr.mxu0 %v520
        %898 = vmatpush1.msra.mxu0 %v519
        %899 = vmatprep.subr.mxu0 %v524
        %900 = vmatpush1.msra.mxu0 %v523
        %901 = vmatprep.subr.mxu0 %v528
        %902 = vmatpush1.msra.mxu0 %v527
        %903 = vmatprep.subr.mxu0 %v532
        %904 = vmatpush1.msra.mxu0 %v531
        %905 = vmatprep.subr.mxu0 %v536
        %906 = vmatpush1.msra.mxu0 %v535
        %907 = vmatprep.subr.mxu0 %v540
        %908 = vmatpush1.msra.mxu0 %v539
        %909 = vmatprep.subr.mxu0 %v544
        %910 = vmatpush1.msra.mxu0 %v543
        %911 = vmatprep.subr.mxu0 %v548
        %912 = vmatpush1.msra.mxu0 %v547
        %913 = vmatprep.subr.mxu0 %v552
        %914 = vmatpush1.msra.mxu0 %v551
        %915 = vmatprep.subr.mxu0 0.0
        %916 = vmatpush1.msra.mxu0 0.0
        %917 = vmatprep.subr.mxu0 0.0
        %918 = vmatpush1.msra.mxu0 0.0
        %919 = vmatprep.subr.mxu0 0.0
        %920 = vmatpush1.msra.mxu0 0.0
        %921 = vmatprep.subr.mxu0 0.0
        %922 = vmatpush1.msra.mxu0 0.0
        %923 = vmatprep.subr.mxu0 0.0
        %924 = vmatpush1.msra.mxu0 0.0
        %925 = vmatprep.subr.mxu0 0.0
        %926 = vmatpush1.msra.mxu0 0.0
        %927 = vmatprep.subr.mxu0 0.0
        %928 = vmatpush1.msra.mxu0 0.0
        %929 = vmatprep.subr.mxu0 0.0
        %930 = vmatpush1.msra.mxu0 0.0
        %931 = vmatprep.subr.mxu0 0.0
        %932 = vmatpush1.msra.mxu0 0.0
        %933 = vmatprep.subr.mxu0 0.0
        %934 = vmatpush1.msra.mxu0 0.0
        %935 = vmatprep.subr.mxu0 0.0
        %936 = vmatpush1.msra.mxu0 0.0
        %937 = vmatprep.subr.mxu0 0.0
        %938 = vmatpush1.msra.mxu0 0.0
        %939 = vmatprep.subr.mxu0 0.0
        %940 = vmatpush1.msra.mxu0 0.0
        %941 = vmatprep.subr.mxu0 0.0
        %942 = vmatpush1.msra.mxu0 0.0
        %943 = vmatprep.subr.mxu0 0.0
        %944 = vmatpush1.msra.mxu0 0.0
        %945 = vmatprep.subr.mxu0 0.0
        %946 = vmatpush1.msra.mxu0 0.0
        %947 = vmatprep.mubr.f32.mxu0 0.0
        %948 = vmatmul.mubr.f32.gmra.mrb[0].mxu0 %v882
        %v949 = vpop.f32.mrb[0].mxu0
        %v950 = vadd.f32 0.0, %v949
        %v951 = vpop.f32.mrb[0].mxu0
        %v952 = vadd.f32 0.0, %v951
        %953 = vdwg.mxu0
        %954 = vmatprep.subr.mxu0 %v494
        %955 = vmatpush1.msra.mxu0 %v493
        %956 = vmatprep.subr.mxu0 %v498
        %957 = vmatpush1.msra.mxu0 %v497
        %958 = vmatprep.subr.mxu0 %v502
        %959 = vmatpush1.msra.mxu0 %v501
        %960 = vmatprep.subr.mxu0 %v506
        %961 = vmatpush1.msra.mxu0 %v505
        %962 = vmatprep.subr.mxu0 %v510
        %963 = vmatpush1.msra.mxu0 %v509
        %964 = vmatprep.subr.mxu0 %v514
        %965 = vmatpush1.msra.mxu0 %v513
        %966 = vmatprep.subr.mxu0 %v518
        %967 = vmatpush1.msra.mxu0 %v517
        %968 = vmatprep.subr.mxu0 %v522
        %969 = vmatpush1.msra.mxu0 %v521
        %970 = vmatprep.subr.mxu0 %v526
        %971 = vmatpush1.msra.mxu0 %v525
        %972 = vmatprep.subr.mxu0 %v530
        %973 = vmatpush1.msra.mxu0 %v529
        %974 = vmatprep.subr.mxu0 %v534
        %975 = vmatpush1.msra.mxu0 %v533
        %976 = vmatprep.subr.mxu0 %v538
        %977 = vmatpush1.msra.mxu0 %v537
        %978 = vmatprep.subr.mxu0 %v542
        %979 = vmatpush1.msra.mxu0 %v541
        %980 = vmatprep.subr.mxu0 %v546
        %981 = vmatpush1.msra.mxu0 %v545
        %982 = vmatprep.subr.mxu0 %v550
        %983 = vmatpush1.msra.mxu0 %v549
        %984 = vmatprep.subr.mxu0 %v554
        %985 = vmatpush1.msra.mxu0 %v553
        %986 = vmatprep.subr.mxu0 0.0
        %987 = vmatpush1.msra.mxu0 0.0
        %988 = vmatprep.subr.mxu0 0.0
        %989 = vmatpush1.msra.mxu0 0.0
        %990 = vmatprep.subr.mxu0 0.0
        %991 = vmatpush1.msra.mxu0 0.0
        %992 = vmatprep.subr.mxu0 0.0
        %993 = vmatpush1.msra.mxu0 0.0
        %994 = vmatprep.subr.mxu0 0.0
        %995 = vmatpush1.msra.mxu0 0.0
        %996 = vmatprep.subr.mxu0 0.0
        %997 = vmatpush1.msra.mxu0 0.0
        %998 = vmatprep.subr.mxu0 0.0
        %999 = vmatpush1.msra.mxu0 0.0
        %1000 = vmatprep.subr.mxu0 0.0
        %1001 = vmatpush1.msra.mxu0 0.0
        %1002 = vmatprep.subr.mxu0 0.0
        %1003 = vmatpush1.msra.mxu0 0.0
        %1004 = vmatprep.subr.mxu0 0.0
        %1005 = vmatpush1.msra.mxu0 0.0
        %1006 = vmatprep.subr.mxu0 0.0
        %1007 = vmatpush1.msra.mxu0 0.0
        %1008 = vmatprep.subr.mxu0 0.0
        %1009 = vmatpush1.msra.mxu0 0.0
        %1010 = vmatprep.subr.mxu0 0.0
        %1011 = vmatpush1.msra.mxu0 0.0
        %1012 = vmatprep.subr.mxu0 0.0
        %1013 = vmatpush1.msra.mxu0 0.0
        %1014 = vmatprep.subr.mxu0 0.0
        %1015 = vmatpush1.msra.mxu0 0.0
        %1016 = vmatprep.subr.mxu0 0.0
        %1017 = vmatpush1.msra.mxu0 0.0
        %1018 = vmatprep.mubr.f32.mxu0 0.0
        %1019 = vmatmul.mubr.f32.gmra.mrb[0].mxu0 %v882
        %v1020 = vpop.f32.mrb[0].mxu0
        %v1021 = vadd.f32 0.0, %v1020
        %v1022 = vpop.f32.mrb[0].mxu0
        %v1023 = vadd.f32 0.0, %v1022
        %1024 = vdwg.mxu0
        %v1025 = vadd.f32 %v390, %v950
        %v1026 = vadd.f32 %v392, %v952
        %v1027 = vadd.f32 %v479, %v1021
        %v1028 = vadd.f32 %v481, %v1023
        %v1029 = vmul.f32 %v1025, 0.5
        %v1030 = vtanh.pop %v1029
        %v1031 = vadd.f32 %v1030, 1.0
        %v1032 = vmul.f32 %v1031, 0.5
        %v1033 = vmul.f32 %v1026, 0.5
        %v1034 = vtanh.pop %v1033
        %v1035 = vadd.f32 %v1034, 1.0
        %v1036 = vmul.f32 %v1035, 0.5
        %v1037 = vtanh.pop %v1027
        %v1038 = vmul.f32 %v1028, 0.5
        %v1039 = vtanh.pop %v1038
        %v1040 = vadd.f32 %v1039, 1.0
        %v1041 = vmul.f32 %v1040, 0.5
        %v1042 = vmul.f32 %v1036, %v880
        %v1043 = vmul.f32 %v1032, %v1037
        %v1044 = vadd.f32 %v1042, %v1043
        %v1045 = vtanh.pop %v1044
        %v1046 = vmul.f32 %v1041, %v1045
        %s1047 = smul.u32 %s25, 4
        %s1048 = sadd.s32 %s1047, 2
        %p1049 = scmp.lt.s32.totalorder %s1048, 10
        %s1050 = scalar_select %p1049, 1, 0
        %v1051 = vstv %s1050
        %vm1052 = vcmp.eq.s32.totalorder %v1051, 1
        %v1053 = vsel %vm1052, %v1044, %v880
        %v1054 = vsel %vm1052, %v1046, %v882
        %1055 = vmatprep.subr.mxu0 %v492
        %1056 = vmatpush1.msra.mxu0 %v491
        %1057 = vmatprep.subr.mxu0 %v496
        %1058 = vmatpush1.msra.mxu0 %v495
        %1059 = vmatprep.subr.mxu0 %v500
        %1060 = vmatpush1.msra.mxu0 %v499
        %1061 = vmatprep.subr.mxu0 %v504
        %1062 = vmatpush1.msra.mxu0 %v503
        %1063 = vmatprep.subr.mxu0 %v508
        %1064 = vmatpush1.msra.mxu0 %v507
        %1065 = vmatprep.subr.mxu0 %v512
        %1066 = vmatpush1.msra.mxu0 %v511
        %1067 = vmatprep.subr.mxu0 %v516
        %1068 = vmatpush1.msra.mxu0 %v515
        %1069 = vmatprep.subr.mxu0 %v520
        %1070 = vmatpush1.msra.mxu0 %v519
        %1071 = vmatprep.subr.mxu0 %v524
        %1072 = vmatpush1.msra.mxu0 %v523
        %1073 = vmatprep.subr.mxu0 %v528
        %1074 = vmatpush1.msra.mxu0 %v527
        %1075 = vmatprep.subr.mxu0 %v532
        %1076 = vmatpush1.msra.mxu0 %v531
        %1077 = vmatprep.subr.mxu0 %v536
        %1078 = vmatpush1.msra.mxu0 %v535
        %1079 = vmatprep.subr.mxu0 %v540
        %1080 = vmatpush1.msra.mxu0 %v539
        %1081 = vmatprep.subr.mxu0 %v544
        %1082 = vmatpush1.msra.mxu0 %v543
        %1083 = vmatprep.subr.mxu0 %v548
        %1084 = vmatpush1.msra.mxu0 %v547
        %1085 = vmatprep.subr.mxu0 %v552
        %1086 = vmatpush1.msra.mxu0 %v551
        %1087 = vmatprep.subr.mxu0 0.0
        %1088 = vmatpush1.msra.mxu0 0.0
        %1089 = vmatprep.subr.mxu0 0.0
        %1090 = vmatpush1.msra.mxu0 0.0
        %1091 = vmatprep.subr.mxu0 0.0
        %1092 = vmatpush1.msra.mxu0 0.0
        %1093 = vmatprep.subr.mxu0 0.0
        %1094 = vmatpush1.msra.mxu0 0.0
        %1095 = vmatprep.subr.mxu0 0.0
        %1096 = vmatpush1.msra.mxu0 0.0
        %1097 = vmatprep.subr.mxu0 0.0
        %1098 = vmatpush1.msra.mxu0 0.0
        %1099 = vmatprep.subr.mxu0 0.0
        %1100 = vmatpush1.msra.mxu0 0.0
        %1101 = vmatprep.subr.mxu0 0.0
        %1102 = vmatpush1.msra.mxu0 0.0
        %1103 = vmatprep.subr.mxu0 0.0
        %1104 = vmatpush1.msra.mxu0 0.0
        %1105 = vmatprep.subr.mxu0 0.0
        %1106 = vmatpush1.msra.mxu0 0.0
        %1107 = vmatprep.subr.mxu0 0.0
        %1108 = vmatpush1.msra.mxu0 0.0
        %1109 = vmatprep.subr.mxu0 0.0
        %1110 = vmatpush1.msra.mxu0 0.0
        %1111 = vmatprep.subr.mxu0 0.0
        %1112 = vmatpush1.msra.mxu0 0.0
        %1113 = vmatprep.subr.mxu0 0.0
        %1114 = vmatpush1.msra.mxu0 0.0
        %1115 = vmatprep.subr.mxu0 0.0
        %1116 = vmatpush1.msra.mxu0 0.0
        %1117 = vmatprep.subr.mxu0 0.0
        %1118 = vmatpush1.msra.mxu0 0.0
        %1119 = vmatprep.mubr.f32.mxu0 0.0
        %1120 = vmatmul.mubr.f32.gmra.mrb[0].mxu0 %v1054
        %v1121 = vpop.f32.mrb[0].mxu0
        %v1122 = vadd.f32 0.0, %v1121
        %v1123 = vpop.f32.mrb[0].mxu0
        %v1124 = vadd.f32 0.0, %v1123
        %1125 = vdwg.mxu0
        %1126 = vmatprep.subr.mxu0 %v494
        %1127 = vmatpush1.msra.mxu0 %v493
        %1128 = vmatprep.subr.mxu0 %v498
        %1129 = vmatpush1.msra.mxu0 %v497
        %1130 = vmatprep.subr.mxu0 %v502
        %1131 = vmatpush1.msra.mxu0 %v501
        %1132 = vmatprep.subr.mxu0 %v506
        %1133 = vmatpush1.msra.mxu0 %v505
        %1134 = vmatprep.subr.mxu0 %v510
        %1135 = vmatpush1.msra.mxu0 %v509
        %1136 = vmatprep.subr.mxu0 %v514
        %1137 = vmatpush1.msra.mxu0 %v513
        %1138 = vmatprep.subr.mxu0 %v518
        %1139 = vmatpush1.msra.mxu0 %v517
        %1140 = vmatprep.subr.mxu0 %v522
        %1141 = vmatpush1.msra.mxu0 %v521
        %1142 = vmatprep.subr.mxu0 %v526
        %1143 = vmatpush1.msra.mxu0 %v525
        %1144 = vmatprep.subr.mxu0 %v530
        %1145 = vmatpush1.msra.mxu0 %v529
        %1146 = vmatprep.subr.mxu0 %v534
        %1147 = vmatpush1.msra.mxu0 %v533
        %1148 = vmatprep.subr.mxu0 %v538
        %1149 = vmatpush1.msra.mxu0 %v537
        %1150 = vmatprep.subr.mxu0 %v542
        %1151 = vmatpush1.msra.mxu0 %v541
        %1152 = vmatprep.subr.mxu0 %v546
        %1153 = vmatpush1.msra.mxu0 %v545
        %1154 = vmatprep.subr.mxu0 %v550
        %1155 = vmatpush1.msra.mxu0 %v549
        %1156 = vmatprep.subr.mxu0 %v554
        %1157 = vmatpush1.msra.mxu0 %v553
        %1158 = vmatprep.subr.mxu0 0.0
        %1159 = vmatpush1.msra.mxu0 0.0
        %1160 = vmatprep.subr.mxu0 0.0
        %1161 = vmatpush1.msra.mxu0 0.0
        %1162 = vmatprep.subr.mxu0 0.0
        %1163 = vmatpush1.msra.mxu0 0.0
        %1164 = vmatprep.subr.mxu0 0.0
        %1165 = vmatpush1.msra.mxu0 0.0
        %1166 = vmatprep.subr.mxu0 0.0
        %1167 = vmatpush1.msra.mxu0 0.0
        %1168 = vmatprep.subr.mxu0 0.0
        %1169 = vmatpush1.msra.mxu0 0.0
        %1170 = vmatprep.subr.mxu0 0.0
        %1171 = vmatpush1.msra.mxu0 0.0
        %1172 = vmatprep.subr.mxu0 0.0
        %1173 = vmatpush1.msra.mxu0 0.0
        %1174 = vmatprep.subr.mxu0 0.0
        %1175 = vmatpush1.msra.mxu0 0.0
        %1176 = vmatprep.subr.mxu0 0.0
        %1177 = vmatpush1.msra.mxu0 0.0
        %1178 = vmatprep.subr.mxu0 0.0
        %1179 = vmatpush1.msra.mxu0 0.0
        %1180 = vmatprep.subr.mxu0 0.0
        %1181 = vmatpush1.msra.mxu0 0.0
        %1182 = vmatprep.subr.mxu0 0.0
        %1183 = vmatpush1.msra.mxu0 0.0
        %1184 = vmatprep.subr.mxu0 0.0
        %1185 = vmatpush1.msra.mxu0 0.0
        %1186 = vmatprep.subr.mxu0 0.0
        %1187 = vmatpush1.msra.mxu0 0.0
        %1188 = vmatprep.subr.mxu0 0.0
        %1189 = vmatpush1.msra.mxu0 0.0
        %1190 = vmatprep.mubr.f32.mxu0 0.0
        %1191 = vmatmul.mubr.f32.gmra.mrb[0].mxu0 %v1054
        %v1192 = vpop.f32.mrb[0].mxu0
        %v1193 = vadd.f32 0.0, %v1192
        %v1194 = vpop.f32.mrb[0].mxu0
        %v1195 = vadd.f32 0.0, %v1194
        %1196 = vdwg.mxu0
        %v1197 = vadd.f32 %v396, %v1122
        %v1198 = vadd.f32 %v398, %v1124
        %v1199 = vadd.f32 %v485, %v1193
        %v1200 = vadd.f32 %v487, %v1195
        %v1201 = vmul.f32 %v1197, 0.5
        %v1202 = vtanh.pop %v1201
        %v1203 = vadd.f32 %v1202, 1.0
        %v1204 = vmul.f32 %v1203, 0.5
        %v1205 = vmul.f32 %v1198, 0.5
        %v1206 = vtanh.pop %v1205
        %v1207 = vadd.f32 %v1206, 1.0
        %v1208 = vmul.f32 %v1207, 0.5
        %v1209 = vtanh.pop %v1199
        %v1210 = vmul.f32 %v1200, 0.5
        %v1211 = vtanh.pop %v1210
        %v1212 = vadd.f32 %v1211, 1.0
        %v1213 = vmul.f32 %v1212, 0.5
        %v1214 = vmul.f32 %v1208, %v1053
        %v1215 = vmul.f32 %v1204, %v1209
        %v1216 = vadd.f32 %v1214, %v1215
        %v1217 = vtanh.pop %v1216
        %v1218 = vmul.f32 %v1213, %v1217
        %s1219 = sadd.s32 %s1047, 3
        %p1220 = scmp.lt.s32.totalorder %s1219, 10
        %s1221 = scalar_select %p1220, 1, 0
        %v1222 = vstv %s1221
        %vm1223 = vcmp.eq.s32.totalorder %v1222, 1
        %v1224 = vsel %vm1223, %v1216, %v1053
        %v1225 = vsel %vm1223, %v1218, %v1054
        %1226 = vst [vmem:[#allocation2] sm:$0xff] %v1225
        %1227 = vst [vmem:[#allocation3] sm:$0xff] %v1224
        %1228 = vst [vmem:[#allocation12] sm:$0xff] %v1225
        // Predicated region
        $region49: #{tpu_custom_call.1} parent=27 // pred_check
          %p1229 = pneg %p99
        $region50: #{tpu_custom_call.1} parent=27 // pred_check_branch
          %1231 = sbr.rel (%p1229) target = $region52
        $region51: #{tpu_custom_call.1} parent=27 // pred_region
          %s1233 = ssub.s32 128, 128
          %1234 = vsyncadd [#allocation9], %s1233
          %s1235 = smul.addr %s24, 128
          %s1236 = scalar_lea.hbm %s4, %s1235
          %s1238 = sshll.u32 [#allocation12], 4
          %s1239 = int_to_ptr.vmem [resolvable:$true] %s1238
          %1241 = dma.vmem_to_hbm [thread:$0]  %s1239, 128, %s1236, [#allocation9]
        $region52: #{tpu_custom_call.1} parent=27 // pred_fallthru
          _
        // Predicated region
        $region53: #{tpu_custom_call.1} parent=27 // pred_check
          %p1242 = pneg %p99
        $region54: #{tpu_custom_call.1} parent=27 // pred_check_branch
          %1244 = sbr.rel (%p1242) target = $region56
        $region55: #{tpu_custom_call.1} parent=27 // pred_region
          %1245 = dma.done [#allocation9], 128
        $region56: #{tpu_custom_call.1} parent=27 // pred_fallthru
          _
      $region28: #{tpu_custom_call.1} parent=5 // pred_fallthru
        _
      %p1246 = scmp.le.s32.totalorder 2, %s15
      // Predicated region
      $region57: #{tpu_custom_call.1} parent=5 // pred_check
        %p1247 = pneg %p1246
      $region58: #{tpu_custom_call.1} parent=5 // pred_check_branch
        %1249 = sbr.rel (%p1247) target = $region60
      $region59: #{tpu_custom_call.1} parent=5 // pred_region
        %s1250 = ssub.s32 %s15, 2
      $region60: #{tpu_custom_call.1} parent=5 // pred_fallthru
        _
    $region6: #{tpu_custom_call.1} parent=1 // loop_footer
      %s19 = sadd.s32 1, %s15
    $region7: #{tpu_custom_call.1} parent=1 // loop_footer_branch
      %14 = sbr.rel target = $region3
    $region8: #{tpu_custom_call.1} parent=1 // loop_exit
      _
    %1251 = vsyncpa [#allocation8], 1
    %s1252 = scalar_lea.sflag [#allocation8], 1
    %1253 = vsyncpa %s1252, 1
    %1254 = vsyncpa [#allocation11], 1
    %s1255 = scalar_lea.sflag [#allocation11], 1
    %1256 = vsyncpa %s1255, 1
    %1257 = vsyncpa [#allocation9], 1
    %s1258 = scalar_lea.sflag [#allocation9], 1
    %1259 = vsyncpa %s1258, 1
  %1260 = vsyncmov [#allocation6]
  %s1261 = vpop.sfrf %1260
  %p1262 = scmp.eq.s32.totalorder %s1261, 0
  %p1263 = pneg %p1262
  %1265 = shalt.err (%p1263)
  %s1266 = scalar_lea.sflag [#allocation6], 1
  %1267 = vsyncmov %s1266
  %s1268 = vpop.sfrf %1267
  %p1269 = scmp.eq.s32.totalorder %s1268, 0
  %p1270 = pneg %p1269
  %1272 = shalt.err (%p1270)

</llo_original>
